<compile_context>
chip_gen: v7x
topology: tpu7x:2x2x1
jax: 0.10.0
libtpu: 0.0.40
codegen_flags: <defaults>
</compile_context>

<pallas_src>
import jax
import jax.numpy as jnp
from jax import lax
from jax.experimental import pallas as pl
from jax.experimental.pallas import tpu as pltpu


# ----------------------------------------------------------------------------
# Parameter-slab construction (coalesce ego0 + all W/b into one f32 input).
# ----------------------------------------------------------------------------
def _build_param_slab(ego0, w_gc, b_gc):
    """Stacks [ego0; W_0; b_0; W_1; b_1; ...] row-wise, each piece padded to a
    multiple of 8 rows and to a common column width.  Returns (slab, offsets)."""
    width = max([int(ego0.shape[1])] + [int(w.shape[1]) for w in w_gc])
    pieces, offsets = [], {}
    r = 0

    def add(name, x):
        nonlocal r
        pad_r = (-int(x.shape[0])) % 8
        pad_c = width - int(x.shape[1])
        x = jnp.pad(x, ((0, pad_r), (0, pad_c)))
        offsets[name] = r
        pieces.append(x)
        r += int(x.shape[0])

    add("ego", ego0)
    for k, (w, b) in enumerate(zip(w_gc, b_gc)):
        add(f"W{k}", w)
        add(f"b{k}", b)
    return jnp.concatenate(pieces, axis=0), offsets


# ----------------------------------------------------------------------------
# Fused Pallas kernel: both GCN layers + concat + the 5 index lookups.
# ----------------------------------------------------------------------------
def sgcn_propagate_and_lookup(a_hat, user_emb, item_emb, w_gc, b_gc, idx,
                              n_groups=5):
    n_nodes = int(a_hat.shape[0])
    d0 = int(user_emb.shape[1])
    layer_dims = [d0] + [int(w.shape[1]) for w in w_gc]
    n_layers = len(w_gc)
    d_total = sum(layer_dims)
    n_lookup = int(idx.shape[0])
    per = n_lookup // n_groups          # batch per lookup group

    ego0 = jnp.concatenate([user_emb, item_emb], axis=0)
    slab, offs = _build_param_slab(ego0, w_gc, b_gc)   # one f32 input DMA
    a_bf16 = a_hat.astype(jnp.bfloat16)                # halve A_hat traffic

    def kernel(a_ref, slab_ref, idx_ref, *out_refs):
        a = a_ref[...]                                           # (N, N) bf16
        ego = slab_ref[offs["ego"]:offs["ego"] + n_nodes, 0:d0]  # (N, d0) f32
        pieces = [ego]                                           # ego_0 piece
        for k in range(n_layers):                                # static unroll
            d_in, d_out = layer_dims[k], layer_dims[k + 1]
            w = slab_ref[offs[f"W{k}"]:offs[f"W{k}"] + d_in, 0:d_out]
            b = slab_ref[offs[f"b{k}"]:offs[f"b{k}"] + 1, 0:d_out]
            # side = A_hat @ ego  (bf16 operands, f32 accumulation on MXU)
            side = jnp.dot(a, ego.astype(jnp.bfloat16),
                           preferred_element_type=jnp.float32)
            # sum = side @ W + b
            summ = jnp.dot(side.astype(jnp.bfloat16), w.astype(jnp.bfloat16),
                           preferred_element_type=jnp.float32) + b
            # LeakyReLU(0.2): max(x, 0.2 x)  (slope < 1)
            ego = jnp.maximum(summ, 0.2 * summ)
            # TODO(synk): mess_dropout (eval path, rate 0 -> identity)
            # F.normalize(p=2, dim=1) == x * rsqrt(max(sum(x^2), 1e-24))
            sumsq = jnp.sum(ego * ego, axis=-1, keepdims=True)
            pieces.append(ego * lax.rsqrt(jnp.maximum(sumsq, 1e-24)))
        table = jnp.concatenate(pieces, axis=-1)                 # (N, d_total)

        # Fused lookups: one-hot(idx) @ table on the idle MXU (HIGHEST
        # precision -> exact to ~f32 ulp for a 0/1 left operand).
        node_iota = lax.broadcasted_iota(jnp.int32, (n_lookup, n_nodes), 1)
        onehot = (idx_ref[...] == node_iota).astype(jnp.float32)  # (L, N)
        gathered = jnp.dot(onehot, table,
                           precision=jax.lax.Precision.HIGHEST,
                           preferred_element_type=jnp.float32)    # (L, d_total)
        for g, o_ref in enumerate(out_refs):
            o_ref[...] = gathered[g * per:(g + 1) * per, :]

    # Advisory cost estimate for XLA's scheduler.
    flops = 0
    d_in = d0
    for d_out in layer_dims[1:]:
        flops += 2 * n_nodes * n_nodes * d_in + 2 * n_nodes * d_in * d_out
        d_in = d_out
    flops += 2 * n_lookup * n_nodes * d_total
    transcendentals = n_nodes * n_layers
    bytes_accessed = (n_nodes * n_nodes * 2 + int(slab.size) * 4
                      + int(idx.size) * 4 + n_groups * per * d_total * 4)

    out_shape = tuple(jax.ShapeDtypeStruct((per, d_total), jnp.float32)
                      for _ in range(n_groups))
    out_specs = tuple(pl.BlockSpec((per, d_total), lambda i: (0, 0))
                      for _ in range(n_groups))
    in_specs = [
        pl.BlockSpec((n_nodes, n_nodes), lambda i: (0, 0)),      # A_hat (bf16)
        pl.BlockSpec(tuple(int(s) for s in slab.shape), lambda i: (0, 0)),
        pl.BlockSpec(tuple(int(s) for s in idx.shape), lambda i: (0, 0)),
    ]

    return pl.pallas_call(
        kernel,
        out_shape=out_shape,
        grid_spec=pltpu.PrefetchScalarGridSpec(
            num_scalar_prefetch=0,
            grid=(1,),                    # whole problem in one step
            in_specs=in_specs,
            out_specs=out_specs,
        ),
        compiler_params=pltpu.CompilerParams(
            dimension_semantics=("arbitrary",),
        ),
        cost_estimate=pl.CostEstimate(
            flops=flops,
            transcendentals=transcendentals,
            bytes_accessed=bytes_accessed,
        ),
    )(a_bf16, slab, idx)


# ----------------------------------------------------------------------------
# Forward wrapper (matches SGCN.forward, drop_flag=False / eval path).
# ----------------------------------------------------------------------------
def sgcn_forward(params, a_hat, users, pos_items, neg_items,
                 pos_friends, neg_friends, n_user):
    batch = int(users.shape[0])
    # Item indices point into the lower half of the node table.
    idx = jnp.concatenate([
        users, pos_items + n_user, neg_items + n_user, pos_friends, neg_friends
    ]).astype(jnp.int32).reshape(5 * batch, 1)
    u_g, pos_i_g, neg_i_g, pos_f_g, neg_f_g = sgcn_propagate_and_lookup(
        a_hat, params["user_emb"], params["item_emb"],
        params["W_gc"], params["b_gc"], idx, n_groups=5)
    return u_g, pos_i_g, neg_i_g, pos_f_g, neg_f_g


# ----------------------------------------------------------------------------
# Pure-JAX reference (for correctness checks only).
# ----------------------------------------------------------------------------
def reference_forward(params, a_hat, users, pos_items, neg_items,
                      pos_friends, neg_friends, n_user, mxu_bf16):
    ego = jnp.concatenate([params["user_emb"], params["item_emb"]], axis=0)
    allemb = [ego]
    for w, b in zip(params["W_gc"], params["b_gc"]):
        if mxu_bf16:
            side = jnp.dot(a_hat.astype(jnp.bfloat16), ego.astype(jnp.bfloat16),
                           preferred_element_type=jnp.float32)
            summ = jnp.dot(side.astype(jnp.bfloat16), w.astype(jnp.bfloat16),
                           preferred_element_type=jnp.float32) + b
        else:
            side = jnp.dot(a_hat, ego, precision=jax.lax.Precision.HIGHEST)
            summ = jnp.dot(side, w, precision=jax.lax.Precision.HIGHEST) + b
        ego = jnp.where(summ >= 0.0, summ, 0.2 * summ)
        nrm = jnp.sqrt(jnp.maximum(jnp.sum(ego * ego, axis=1, keepdims=True),
                                   1e-24))
        allemb.append(ego / nrm)
    allemb = jnp.concatenate(allemb, axis=1)
    u_t, i_t = allemb[:n_user], allemb[n_user:]
    return (u_t[users], i_t[pos_items], i_t[neg_items],
            u_t[pos_friends], u_t[neg_friends])


# ----------------------------------------------------------------------------
# Deterministic input construction (plain JAX glue).
# ----------------------------------------------------------------------------
def xavier_uniform(key, shape):
    fan_in, fan_out = shape
    bound = jnp.sqrt(6.0 / (fan_in + fan_out))
    return jax.random.uniform(key, shape, jnp.float32, -bound, bound)


def build_norm_adj(key, n_user, n_item):
    """Dense symmetric-normalized bipartite adjacency (D^-1/2 A D^-1/2)."""
    n = n_user + n_item
    r = jax.random.bernoulli(key, 0.15, (n_user, n_item)).astype(jnp.float32)
    a = jnp.zeros((n, n), jnp.float32)
    a = a.at[:n_user, n_user:].set(r)
    a = a.at[n_user:, :n_user].set(r.T)
    deg = jnp.sum(a, axis=1)
    d_inv_sqrt = jnp.where(deg > 0, 1.0 / jnp.sqrt(deg), 0.0)
    return a * d_inv_sqrt[:, None] * d_inv_sqrt[None, :]


# ----------------------------------------------------------------------------
if __name__ == "__main__":
    key = jax.random.PRNGKey(0)
    k_adj, k_ue, k_ie, k_idx, *k_w = jax.random.split(key, 9)

    n_user, n_item = 24, 40           # N = 64 nodes
    emb_size = 16
    layer_sizes = [16, 16]            # args.layer_size
    batch = 8

    layers = [emb_size] + layer_sizes
    params = {
        "user_emb": xavier_uniform(k_ue, (n_user, emb_size)),
        "item_emb": xavier_uniform(k_ie, (n_item, emb_size)),
        "W_gc": [xavier_uniform(k_w[2 * k], (layers[k], layers[k + 1]))
                 for k in range(len(layer_sizes))],
        "b_gc": [xavier_uniform(k_w[2 * k + 1], (1, layers[k + 1]))
                 for k in range(len(layer_sizes))],
    }

    a_hat = build_norm_adj(k_adj, n_user, n_item)

    ki = jax.random.split(k_idx, 5)
    users = jax.random.randint(ki[0], (batch,), 0, n_user)
    pos_items = jax.random.randint(ki[1], (batch,), 0, n_item)
    neg_items = jax.random.randint(ki[2], (batch,), 0, n_item)
    pos_friends = jax.random.randint(ki[3], (batch,), 0, n_user)
    neg_friends = jax.random.randint(ki[4], (batch,), 0, n_user)

    fwd = jax.jit(sgcn_forward, static_argnames=("n_user",))
    outs = fwd(params, a_hat, users, pos_items, neg_items,
               pos_friends, neg_friends, n_user=n_user)
    outs = jax.block_until_ready(outs)

    # References: one matching the kernel's bf16 MXU operands, one full f32.
    ref_match = reference_forward(params, a_hat, users, pos_items, neg_items,
                                  pos_friends, neg_friends, n_user,
                                  mxu_bf16=True)
    ref_f32 = reference_forward(params, a_hat, users, pos_items, neg_items,
                                pos_friends, neg_friends, n_user,
                                mxu_bf16=False)

    d_total = emb_size * (1 + len(layer_sizes))
    for o, rm, rf in zip(outs, ref_match, ref_f32):
        assert o.shape == (batch, d_total), o.shape
        assert o.dtype == jnp.float32
        assert bool(jnp.all(jnp.isfinite(o)))
        # Matches the bf16-operand reference tightly ...
        assert bool(jnp.allclose(o, rm, atol=1e-2, rtol=1e-2)), \
            float(jnp.max(jnp.abs(o - rm)))
        # ... and the f32 reference loosely (bf16-on-MXU is numerically safe).
        assert float(jnp.max(jnp.abs(o - rf))) < 0.2

    print("KERNEL_OK")
</pallas_src>

<mosaic_0001>
module attributes {stable_mosaic.version = 11 : i64} {
  func.func @kernel(%arg0: i32, %arg1: memref<64x64xbf16, #tpu.memory_space<vmem>>, %arg2: memref<112x16xf32, #tpu.memory_space<vmem>>, %arg3: memref<40x1xi32, #tpu.memory_space<vmem>>, %arg4: memref<8x48xf32, #tpu.memory_space<vmem>>, %arg5: memref<8x48xf32, #tpu.memory_space<vmem>>, %arg6: memref<8x48xf32, #tpu.memory_space<vmem>>, %arg7: memref<8x48xf32, #tpu.memory_space<vmem>>, %arg8: memref<8x48xf32, #tpu.memory_space<vmem>>) attributes {dimension_semantics = [#tpu.dimension_semantics<arbitrary>], iteration_bounds = array<i64: 1>, scalar_prefetch = 0 : i64, scratch_operands = 0 : i64, tpu.core_type = #tpu.core_type<tc>, window_params = [{pipeline_mode = #tpu.pipeline_mode<synchronous>, transform_indices = @transform_0, window_bounds = array<i64: 64, 64>}, {pipeline_mode = #tpu.pipeline_mode<synchronous>, transform_indices = @transform_1, window_bounds = array<i64: 112, 16>}, {pipeline_mode = #tpu.pipeline_mode<synchronous>, transform_indices = @transform_2, window_bounds = array<i64: 40, 1>}, {pipeline_mode = #tpu.pipeline_mode<synchronous>, transform_indices = @transform_3, window_bounds = array<i64: 8, 48>}, {pipeline_mode = #tpu.pipeline_mode<synchronous>, transform_indices = @transform_4, window_bounds = array<i64: 8, 48>}, {pipeline_mode = #tpu.pipeline_mode<synchronous>, transform_indices = @transform_5, window_bounds = array<i64: 8, 48>}, {pipeline_mode = #tpu.pipeline_mode<synchronous>, transform_indices = @transform_6, window_bounds = array<i64: 8, 48>}, {pipeline_mode = #tpu.pipeline_mode<synchronous>, transform_indices = @transform_7, window_bounds = array<i64: 8, 48>}]} {
    %c0 = arith.constant 0 : index
    %c0_0 = arith.constant 0 : index
    %0 = vector.load %arg1[%c0, %c0_0] : memref<64x64xbf16, #tpu.memory_space<vmem>>, vector<64x64xbf16>
    %c0_1 = arith.constant 0 : index
    %c0_2 = arith.constant 0 : index
    %1 = vector.load %arg2[%c0_1, %c0_2] : memref<112x16xf32, #tpu.memory_space<vmem>>, vector<64x16xf32>
    %c64 = arith.constant 64 : index
    %c0_3 = arith.constant 0 : index
    %2 = vector.load %arg2[%c64, %c0_3] : memref<112x16xf32, #tpu.memory_space<vmem>>, vector<16x16xf32>
    %c80 = arith.constant 80 : index
    %c0_4 = arith.constant 0 : index
    %3 = vector.load %arg2[%c80, %c0_4] : memref<112x16xf32, #tpu.memory_space<vmem>>, vector<1x16xf32>
    %4 = arith.truncf %1 : vector<64x16xf32> to vector<64x16xbf16>
    %cst = arith.constant dense<0.000000e+00> : vector<64x16xf32>
    %5 = tpu.matmul %0, %4, %cst {dimension_numbers = #tpu.dot_dimension_numbers<[1], [0], [0], [1], [0, 0, 1, 1], [], []>} : vector<64x64xbf16>, vector<64x16xbf16>, vector<64x16xf32> -> vector<64x16xf32>
    %6 = arith.truncf %5 : vector<64x16xf32> to vector<64x16xbf16>
    %7 = arith.truncf %2 : vector<16x16xf32> to vector<16x16xbf16>
    %cst_5 = arith.constant dense<0.000000e+00> : vector<64x16xf32>
    %8 = tpu.matmul %6, %7, %cst_5 {dimension_numbers = #tpu.dot_dimension_numbers<[1], [0], [0], [1], [0, 0, 1, 1], [], []>} : vector<64x16xbf16>, vector<16x16xbf16>, vector<64x16xf32> -> vector<64x16xf32>
    %9 = vector.broadcast %3 : vector<1x16xf32> to vector<64x16xf32>
    %10 = arith.addf %8, %9 : vector<64x16xf32>
    %cst_6 = arith.constant 2.000000e-01 : f32
    %11 = vector.broadcast %cst_6 : f32 to vector<64x16xf32>
    %12 = arith.mulf %11, %10 : vector<64x16xf32>
    %13 = arith.maximumf %10, %12 : vector<64x16xf32>
    %14 = arith.mulf %13, %13 : vector<64x16xf32>
    %cst_7 = arith.constant dense<0.000000e+00> : vector<64xf32>
    %15 = vector.multi_reduction <add>, %14, %cst_7 [1] : vector<64x16xf32> to vector<64xf32>
    %16 = vector.shape_cast %15 : vector<64xf32> to vector<64x1xf32>
    %cst_8 = arith.constant 1.000000e-24 : f32
    %17 = vector.broadcast %cst_8 : f32 to vector<64x1xf32>
    %18 = arith.maximumf %16, %17 : vector<64x1xf32>
    %19 = math.rsqrt %18 : vector<64x1xf32>
    %20 = vector.broadcast %19 : vector<64x1xf32> to vector<64x16xf32>
    %21 = arith.mulf %13, %20 : vector<64x16xf32>
    %c88 = arith.constant 88 : index
    %c0_9 = arith.constant 0 : index
    %22 = vector.load %arg2[%c88, %c0_9] : memref<112x16xf32, #tpu.memory_space<vmem>>, vector<16x16xf32>
    %c104 = arith.constant 104 : index
    %c0_10 = arith.constant 0 : index
    %23 = vector.load %arg2[%c104, %c0_10] : memref<112x16xf32, #tpu.memory_space<vmem>>, vector<1x16xf32>
    %24 = arith.truncf %13 : vector<64x16xf32> to vector<64x16xbf16>
    %cst_11 = arith.constant dense<0.000000e+00> : vector<64x16xf32>
    %25 = tpu.matmul %0, %24, %cst_11 {dimension_numbers = #tpu.dot_dimension_numbers<[1], [0], [0], [1], [0, 0, 1, 1], [], []>} : vector<64x64xbf16>, vector<64x16xbf16>, vector<64x16xf32> -> vector<64x16xf32>
    %26 = arith.truncf %25 : vector<64x16xf32> to vector<64x16xbf16>
    %27 = arith.truncf %22 : vector<16x16xf32> to vector<16x16xbf16>
    %cst_12 = arith.constant dense<0.000000e+00> : vector<64x16xf32>
    %28 = tpu.matmul %26, %27, %cst_12 {dimension_numbers = #tpu.dot_dimension_numbers<[1], [0], [0], [1], [0, 0, 1, 1], [], []>} : vector<64x16xbf16>, vector<16x16xbf16>, vector<64x16xf32> -> vector<64x16xf32>
    %29 = vector.broadcast %23 : vector<1x16xf32> to vector<64x16xf32>
    %30 = arith.addf %28, %29 : vector<64x16xf32>
    %cst_13 = arith.constant 2.000000e-01 : f32
    %31 = vector.broadcast %cst_13 : f32 to vector<64x16xf32>
    %32 = arith.mulf %31, %30 : vector<64x16xf32>
    %33 = arith.maximumf %30, %32 : vector<64x16xf32>
    %34 = arith.mulf %33, %33 : vector<64x16xf32>
    %cst_14 = arith.constant dense<0.000000e+00> : vector<64xf32>
    %35 = vector.multi_reduction <add>, %34, %cst_14 [1] : vector<64x16xf32> to vector<64xf32>
    %36 = vector.shape_cast %35 : vector<64xf32> to vector<64x1xf32>
    %cst_15 = arith.constant 1.000000e-24 : f32
    %37 = vector.broadcast %cst_15 : f32 to vector<64x1xf32>
    %38 = arith.maximumf %36, %37 : vector<64x1xf32>
    %39 = math.rsqrt %38 : vector<64x1xf32>
    %40 = vector.broadcast %39 : vector<64x1xf32> to vector<64x16xf32>
    %41 = arith.mulf %33, %40 : vector<64x16xf32>
    %42 = tpu.concatenate %1, %21, %41 in 1 : vector<64x16xf32>, vector<64x16xf32>, vector<64x16xf32> -> vector<64x48xf32>
    %43 = tpu.iota {dimensions = array<i32: 1>} : vector<40x64xi32>
    %c0_16 = arith.constant 0 : index
    %c0_17 = arith.constant 0 : index
    %44 = vector.load %arg3[%c0_16, %c0_17] : memref<40x1xi32, #tpu.memory_space<vmem>>, vector<40x1xi32>
    %45 = vector.broadcast %44 : vector<40x1xi32> to vector<40x64xi32>
    %46 = arith.cmpi eq, %45, %43 : vector<40x64xi32>
    %47 = arith.extui %46 : vector<40x64xi1> to vector<40x64xi32>
    %48 = arith.sitofp %47 : vector<40x64xi32> to vector<40x64xf32>
    %cst_18 = arith.constant dense<0.000000e+00> : vector<40x48xf32>
    %49 = tpu.matmul %48, %42, %cst_18 {dimension_numbers = #tpu.dot_dimension_numbers<[1], [0], [0], [1], [0, 0, 1, 1], [], []>, precision = #tpu.contract_precision<fp32>} : vector<40x64xf32>, vector<64x48xf32>, vector<40x48xf32> -> vector<40x48xf32>
    %50 = vector.extract_strided_slice %49 {offsets = [0, 0], sizes = [8, 48], strides = [1, 1]} : vector<40x48xf32> to vector<8x48xf32>
    %c0_19 = arith.constant 0 : index
    %c0_20 = arith.constant 0 : index
    %51 = vector.load %arg4[%c0_19, %c0_20] : memref<8x48xf32, #tpu.memory_space<vmem>>, vector<8x48xf32>
    tpu.vector_store %arg4[%c0_19, %c0_20], %50 {strides = array<i32>} : memref<8x48xf32, #tpu.memory_space<vmem>>, vector<8x48xf32>,
    %52 = vector.extract_strided_slice %49 {offsets = [8, 0], sizes = [8, 48], strides = [1, 1]} : vector<40x48xf32> to vector<8x48xf32>
    %c0_21 = arith.constant 0 : index
    %c0_22 = arith.constant 0 : index
    %53 = vector.load %arg5[%c0_21, %c0_22] : memref<8x48xf32, #tpu.memory_space<vmem>>, vector<8x48xf32>
    tpu.vector_store %arg5[%c0_21, %c0_22], %52 {strides = array<i32>} : memref<8x48xf32, #tpu.memory_space<vmem>>, vector<8x48xf32>,
    %54 = vector.extract_strided_slice %49 {offsets = [16, 0], sizes = [8, 48], strides = [1, 1]} : vector<40x48xf32> to vector<8x48xf32>
    %c0_23 = arith.constant 0 : index
    %c0_24 = arith.constant 0 : index
    %55 = vector.load %arg6[%c0_23, %c0_24] : memref<8x48xf32, #tpu.memory_space<vmem>>, vector<8x48xf32>
    tpu.vector_store %arg6[%c0_23, %c0_24], %54 {strides = array<i32>} : memref<8x48xf32, #tpu.memory_space<vmem>>, vector<8x48xf32>,
    %56 = vector.extract_strided_slice %49 {offsets = [24, 0], sizes = [8, 48], strides = [1, 1]} : vector<40x48xf32> to vector<8x48xf32>
    %c0_25 = arith.constant 0 : index
    %c0_26 = arith.constant 0 : index
    %57 = vector.load %arg7[%c0_25, %c0_26] : memref<8x48xf32, #tpu.memory_space<vmem>>, vector<8x48xf32>
    tpu.vector_store %arg7[%c0_25, %c0_26], %56 {strides = array<i32>} : memref<8x48xf32, #tpu.memory_space<vmem>>, vector<8x48xf32>,
    %58 = vector.extract_strided_slice %49 {offsets = [32, 0], sizes = [8, 48], strides = [1, 1]} : vector<40x48xf32> to vector<8x48xf32>
    %c0_27 = arith.constant 0 : index
    %c0_28 = arith.constant 0 : index
    %59 = vector.load %arg8[%c0_27, %c0_28] : memref<8x48xf32, #tpu.memory_space<vmem>>, vector<8x48xf32>
    tpu.vector_store %arg8[%c0_27, %c0_28], %58 {strides = array<i32>} : memref<8x48xf32, #tpu.memory_space<vmem>>, vector<8x48xf32>,
    return
  }
  func.func @transform_0(%arg0: i32) -> (i32, i32) {
    %c0_i32 = arith.constant 0 : i32
    %c0_i32_0 = arith.constant 0 : i32
    %c0_i32_1 = arith.constant 0 : i32
    return %c0_i32, %c0_i32_0 : i32, i32
  }
  func.func @transform_1(%arg0: i32) -> (i32, i32) {
    %c0_i32 = arith.constant 0 : i32
    %c0_i32_0 = arith.constant 0 : i32
    %c0_i32_1 = arith.constant 0 : i32
    return %c0_i32, %c0_i32_0 : i32, i32
  }
  func.func @transform_2(%arg0: i32) -> (i32, i32) {
    %c0_i32 = arith.constant 0 : i32
    %c0_i32_0 = arith.constant 0 : i32
    %c0_i32_1 = arith.constant 0 : i32
    return %c0_i32, %c0_i32_0 : i32, i32
  }
  func.func @transform_3(%arg0: i32) -> (i32, i32) {
    %c0_i32 = arith.constant 0 : i32
    %c0_i32_0 = arith.constant 0 : i32
    %c0_i32_1 = arith.constant 0 : i32
    return %c0_i32, %c0_i32_0 : i32, i32
  }
  func.func @transform_4(%arg0: i32) -> (i32, i32) {
    %c0_i32 = arith.constant 0 : i32
    %c0_i32_0 = arith.constant 0 : i32
    %c0_i32_1 = arith.constant 0 : i32
    return %c0_i32, %c0_i32_0 : i32, i32
  }
  func.func @transform_5(%arg0: i32) -> (i32, i32) {
    %c0_i32 = arith.constant 0 : i32
    %c0_i32_0 = arith.constant 0 : i32
    %c0_i32_1 = arith.constant 0 : i32
    return %c0_i32, %c0_i32_0 : i32, i32
  }
  func.func @transform_6(%arg0: i32) -> (i32, i32) {
    %c0_i32 = arith.constant 0 : i32
    %c0_i32_0 = arith.constant 0 : i32
    %c0_i32_1 = arith.constant 0 : i32
    return %c0_i32, %c0_i32_0 : i32, i32
  }
  func.func @transform_7(%arg0: i32) -> (i32, i32) {
    %c0_i32 = arith.constant 0 : i32
    %c0_i32_0 = arith.constant 0 : i32
    %c0_i32_1 = arith.constant 0 : i32
    return %c0_i32, %c0_i32_0 : i32, i32
  }
}

</mosaic_0001>

<llo_original>
// kernel: sgcn_forward.1
$region0: #{sgcn_forward.1}
  #allocation0 [shape = 'u32[]', space=smem, size = 0x4, offset = 0x4, fixed_abs, tag = 'smem constant byte address 0x4 - core index']
  #allocation1 [shape = 'u32[144,128]{1,0:T(1,128)}', space=vmem, size = 0x12000, scoped, tag = 'internal scratch']
  %s0 = inlined_call_operand.vmem [shape: bf16[64,64], index: 0, kind: input, shape index: {}]
  %s1 = inlined_call_operand.vmem [shape: f32[112,16], index: 1, kind: input, shape index: {}]
  %s2 = inlined_call_operand.vmem [shape: s32[40,1], index: 2, kind: input, shape index: {}]
  %s3 = inlined_call_operand.hbm [shape: f32[8,48], index: 3, kind: output, shape index: {0}]
  %s4 = inlined_call_operand.hbm [shape: f32[8,48], index: 4, kind: output, shape index: {1}]
  %s5 = inlined_call_operand.hbm [shape: f32[8,48], index: 5, kind: output, shape index: {2}]
  %s6 = inlined_call_operand.hbm [shape: f32[8,48], index: 6, kind: output, shape index: {3}]
  %s7 = inlined_call_operand.hbm [shape: f32[8,48], index: 7, kind: output, shape index: {4}]
  %8 = xla_tuple %s3, %s4, %s5, %s6, %s7
  %s9 = sld [smem:[#allocation0]]
  $region54: #{sgcn_forward.1} parent=0
    _
  %s11 = ssub.s32 1, %s9
  %s12 = scalar_select 0, %s11, %s9
  $region1: #{sgcn_forward.1} parent=0
    #allocation2 [shape = 'u8[4096]{0}', space=vmem, size = 0x1000, scoped, tag = 'output window, operand 0, single buffered']
    #allocation3 [shape = 's32[1]{0}', space=sflag, size = 0x4, scoped, tag = 'scoped memory for sgcn_forward.1']
    #allocation4 [shape = 'u8[4096]{0}', space=vmem, size = 0x1000, scoped, tag = 'output window, operand 1, single buffered']
    #allocation5 [shape = 's32[1]{0}', space=sflag, size = 0x4, scoped, tag = 'scoped memory for sgcn_forward.1']
    #allocation6 [shape = 'u8[4096]{0}', space=vmem, size = 0x1000, scoped, tag = 'output window, operand 2, single buffered']
    #allocation7 [shape = 'u8[4096]{0}', space=vmem, size = 0x1000, scoped, tag = 'output window, operand 3, single buffered']
    #allocation8 [shape = 's32[1]{0}', space=sflag, size = 0x4, scoped, tag = 'scoped memory for sgcn_forward.1']
    #allocation9 [shape = 'u8[4096]{0}', space=vmem, size = 0x1000, scoped, tag = 'output window, operand 4, single buffered']
    %13 = vsyncpa [#allocation3], 0
    %14 = vsyncpa [#allocation5], 0
    %15 = vsyncpa [#allocation8], 0
    // Predicated region
    $region2: #{sgcn_forward.1} parent=1 // pred_check
      _
    $region3: #{sgcn_forward.1} parent=1 // pred_check_branch
      %17 = sbr.rel (0) target = $region5
    $region4: #{sgcn_forward.1} parent=1 // pred_region
      _
    $region5: #{sgcn_forward.1} parent=1 // pred_fallthru
      _
    // Predicated region
    $region6: #{sgcn_forward.1} parent=1 // pred_check
      _
    $region7: #{sgcn_forward.1} parent=1 // pred_check_branch
      %19 = sbr.rel (0) target = $region9
    $region8: #{sgcn_forward.1} parent=1 // pred_region
      _
    $region9: #{sgcn_forward.1} parent=1 // pred_fallthru
      _
    // Predicated region
    $region10: #{sgcn_forward.1} parent=1 // pred_check
      _
    $region11: #{sgcn_forward.1} parent=1 // pred_check_branch
      %21 = sbr.rel (0) target = $region13
    $region12: #{sgcn_forward.1} parent=1 // pred_region
      _
    $region13: #{sgcn_forward.1} parent=1 // pred_fallthru
      _
    %v23 = vld [vmem:[%s0] sm:$0xf]
    %v24 = vld [vmem:[%s0 + $0x4] sm:$0xf]
    %v25 = vld [vmem:[%s0 + $0x8] sm:$0xf]
    %v26 = vld [vmem:[%s0 + $0xc] sm:$0xf]
    %v27 = vld [vmem:[%s0 + $0x10] sm:$0xf]
    %v28 = vld [vmem:[%s0 + $0x14] sm:$0xf]
    %v29 = vld [vmem:[%s0 + $0x18] sm:$0xf]
    %v30 = vld [vmem:[%s0 + $0x1c] sm:$0xf]
    %v31 = vld [vmem:[%s1] sm:$0xff]
    %v32 = vld [vmem:[%s1 + $0x8] sm:$0xff]
    %v33 = vld [vmem:[%s1 + $0x10] sm:$0xff]
    %v34 = vld [vmem:[%s1 + $0x18] sm:$0xff]
    %v35 = vld [vmem:[%s1 + $0x20] sm:$0xff]
    %v36 = vld [vmem:[%s1 + $0x28] sm:$0xff]
    %v37 = vld [vmem:[%s1 + $0x30] sm:$0xff]
    %v38 = vld [vmem:[%s1 + $0x38] sm:$0xff]
    %v39 = vld [vmem:[%s1 + $0x40] sm:$0xff]
    %v40 = vld [vmem:[%s1 + $0x48] sm:$0xff]
    %v41 = vld [vmem:[%s1 + $0x50] sm:$0x1]
    %v42 = vpack.c.bf16 %v32, %v31
    %v43 = vpack.c.bf16 %v34, %v33
    %v44 = vpack.c.bf16 %v36, %v35
    %v45 = vpack.c.bf16 %v38, %v37
    %v54 = vunpack.c.l.b16 %v23
    %v55 = vunpack.c.l.b16 %v24
    %v56 = vunpack.c.l.b16 %v25
    %v57 = vunpack.c.l.b16 %v26
    %v58 = vunpack.c.l.b16 %v27
    %v59 = vunpack.c.l.b16 %v28
    %v60 = vunpack.c.l.b16 %v29
    %v61 = vunpack.c.l.b16 %v30
    %v62 = vpack.c.b16 %v55, %v54
    %v63 = vpack.c.b16 %v57, %v56
    %v64 = vpack.c.b16 %v59, %v58
    %v65 = vpack.c.b16 %v61, %v60
    %vm66 = vcmask 523264
    %v68 = vsel %vm66, %v62, 0
    %v71 = vsel %vm66, %v63, 0
    %v74 = vsel %vm66, %v64, 0
    %v77 = vsel %vm66, %v65, 0
    %79 = vmatprep.subr.bf16.mxu0 0
    %80 = vmatpush1.bf16.msra.mxu0 %v42
    %81 = vmatprep.subr.bf16.mxu0 0
    %82 = vmatpush1.bf16.msra.mxu0 %v43
    %83 = vmatprep.subr.bf16.mxu0 0
    %84 = vmatpush1.bf16.msra.mxu0 %v44
    %85 = vmatprep.subr.bf16.mxu0 0
    %86 = vmatpush1.bf16.msra.mxu0 %v45
    %87 = vmatprep.subr.bf16.mxu0 0
    %88 = vmatpush1.bf16.msra.mxu0 0
    %89 = vmatprep.subr.bf16.mxu0 0
    %90 = vmatpush1.bf16.msra.mxu0 0
    %91 = vmatprep.subr.bf16.mxu0 0
    %92 = vmatpush1.bf16.msra.mxu0 0
    %93 = vmatprep.subr.bf16.mxu0 0
    %94 = vmatpush1.bf16.msra.mxu0 0
    %95 = vmatprep.subr.bf16.mxu0 0
    %96 = vmatpush1.bf16.msra.mxu0 0
    %97 = vmatprep.subr.bf16.mxu0 0
    %98 = vmatpush1.bf16.msra.mxu0 0
    %99 = vmatprep.subr.bf16.mxu0 0
    %100 = vmatpush1.bf16.msra.mxu0 0
    %101 = vmatprep.subr.bf16.mxu0 0
    %102 = vmatpush1.bf16.msra.mxu0 0
    %103 = vmatprep.subr.bf16.mxu0 0
    %104 = vmatpush1.bf16.msra.mxu0 0
    %105 = vmatprep.subr.bf16.mxu0 0
    %106 = vmatpush1.bf16.msra.mxu0 0
    %107 = vmatprep.subr.bf16.mxu0 0
    %108 = vmatpush1.bf16.msra.mxu0 0
    %109 = vmatprep.subr.bf16.mxu0 0
    %110 = vmatpush1.bf16.msra.mxu0 0
    %111 = vmatprep.mubr.bf16.mxu0 0
    %112 = vmatmul.mubr.bf16.gmra.mrb[0].mxu0 %v68
    %v113 = vpop.f32.mrb[0].mxu0
    %v114 = vadd.f32 0.0, %v113
    %v115 = vpop.f32.mrb[0].mxu0
    %v116 = vpop.f32.mrb[0].mxu0
    %v117 = vadd.f32 0.0, %v116
    %v118 = vpop.f32.mrb[0].mxu0
    %119 = vmatprep.mubr.bf16.mxu0 0
    %120 = vmatmul.mubr.bf16.gmra.mrb[0].mxu0 %v71
    %v121 = vpop.f32.mrb[0].mxu0
    %v122 = vadd.f32 0.0, %v121
    %v123 = vpop.f32.mrb[0].mxu0
    %v124 = vpop.f32.mrb[0].mxu0
    %v125 = vadd.f32 0.0, %v124
    %v126 = vpop.f32.mrb[0].mxu0
    %127 = vmatprep.mubr.bf16.mxu0 0
    %128 = vmatmul.mubr.bf16.gmra.mrb[0].mxu0 %v74
    %v129 = vpop.f32.mrb[0].mxu0
    %v130 = vadd.f32 0.0, %v129
    %v131 = vpop.f32.mrb[0].mxu0
    %v132 = vpop.f32.mrb[0].mxu0
    %v133 = vadd.f32 0.0, %v132
    %v134 = vpop.f32.mrb[0].mxu0
    %135 = vmatprep.mubr.bf16.mxu0 0
    %136 = vmatmul.mubr.bf16.gmra.mrb[0].mxu0 %v77
    %v137 = vpop.f32.mrb[0].mxu0
    %v138 = vadd.f32 0.0, %v137
    %v139 = vpop.f32.mrb[0].mxu0
    %v140 = vpop.f32.mrb[0].mxu0
    %v141 = vadd.f32 0.0, %v140
    %v142 = vpop.f32.mrb[0].mxu0
    %143 = vdwg.mxu0
    %v144 = vpack.c.bf16 %v117, %v114
    %v145 = vpack.c.bf16 %v125, %v122
    %v146 = vpack.c.bf16 %v133, %v130
    %v147 = vpack.c.bf16 %v141, %v138
    %v148 = vpack.c.bf16 %v40, %v39
    %v149 = vlaneseq
    %v150 = vshrl.u32 %v149, 7
    %v151 = vsub.s32 0, %v150
    %v152 = vrot.slane %v41, %v151
    %vm153 = vcmask 130048
    %v155 = vsel %vm153, %v144, 0
    %v158 = vsel %vm153, %v145, 0
    %v161 = vsel %vm153, %v146, 0
    %v164 = vsel %vm153, %v147, 0
    %166 = vmatprep.subr.bf16.mxu0 0
    %167 = vmatpush1.bf16.msra.mxu0 %v148
    %168 = vmatprep.subr.bf16.mxu0 0
    %169 = vmatpush1.bf16.msra.mxu0 0
    %170 = vmatprep.subr.bf16.mxu0 0
    %171 = vmatpush1.bf16.msra.mxu0 0
    %172 = vmatprep.subr.bf16.mxu0 0
    %173 = vmatpush1.bf16.msra.mxu0 0
    %174 = vmatprep.subr.bf16.mxu0 0
    %175 = vmatpush1.bf16.msra.mxu0 0
    %176 = vmatprep.subr.bf16.mxu0 0
    %177 = vmatpush1.bf16.msra.mxu0 0
    %178 = vmatprep.subr.bf16.mxu0 0
    %179 = vmatpush1.bf16.msra.mxu0 0
    %180 = vmatprep.subr.bf16.mxu0 0
    %181 = vmatpush1.bf16.msra.mxu0 0
    %182 = vmatprep.subr.bf16.mxu0 0
    %183 = vmatpush1.bf16.msra.mxu0 0
    %184 = vmatprep.subr.bf16.mxu0 0
    %185 = vmatpush1.bf16.msra.mxu0 0
    %186 = vmatprep.subr.bf16.mxu0 0
    %187 = vmatpush1.bf16.msra.mxu0 0
    %188 = vmatprep.subr.bf16.mxu0 0
    %189 = vmatpush1.bf16.msra.mxu0 0
    %190 = vmatprep.subr.bf16.mxu0 0
    %191 = vmatpush1.bf16.msra.mxu0 0
    %192 = vmatprep.subr.bf16.mxu0 0
    %193 = vmatpush1.bf16.msra.mxu0 0
    %194 = vmatprep.subr.bf16.mxu0 0
    %195 = vmatpush1.bf16.msra.mxu0 0
    %196 = vmatprep.subr.bf16.mxu0 0
    %197 = vmatpush1.bf16.msra.mxu0 0
    %198 = vmatprep.mubr.bf16.mxu0 0
    %199 = vmatmul.mubr.bf16.gmra.mrb[0].mxu0 %v155
    %v200 = vpop.f32.mrb[0].mxu0
    %v201 = vadd.f32 %v152, %v200
    %v202 = vpop.f32.mrb[0].mxu0
    %v203 = vpop.f32.mrb[0].mxu0
    %v204 = vadd.f32 %v152, %v203
    %v205 = vpop.f32.mrb[0].mxu0
    %206 = vmatprep.mubr.bf16.mxu0 0
    %207 = vmatmul.mubr.bf16.gmra.mrb[0].mxu0 %v158
    %v208 = vpop.f32.mrb[0].mxu0
    %v209 = vadd.f32 %v152, %v208
    %v210 = vpop.f32.mrb[0].mxu0
    %v211 = vpop.f32.mrb[0].mxu0
    %v212 = vadd.f32 %v152, %v211
    %v213 = vpop.f32.mrb[0].mxu0
    %214 = vmatprep.mubr.bf16.mxu0 0
    %215 = vmatmul.mubr.bf16.gmra.mrb[0].mxu0 %v161
    %v216 = vpop.f32.mrb[0].mxu0
    %v217 = vadd.f32 %v152, %v216
    %v218 = vpop.f32.mrb[0].mxu0
    %v219 = vpop.f32.mrb[0].mxu0
    %v220 = vadd.f32 %v152, %v219
    %v221 = vpop.f32.mrb[0].mxu0
    %222 = vmatprep.mubr.bf16.mxu0 0
    %223 = vmatmul.mubr.bf16.gmra.mrb[0].mxu0 %v164
    %v224 = vpop.f32.mrb[0].mxu0
    %v225 = vadd.f32 %v152, %v224
    %v226 = vpop.f32.mrb[0].mxu0
    %v227 = vpop.f32.mrb[0].mxu0
    %v228 = vadd.f32 %v152, %v227
    %v229 = vpop.f32.mrb[0].mxu0
    %230 = vdwg.mxu0
    %v231 = vmul.f32 %v201, 0.2
    %v232 = vmul.f32 %v204, 0.2
    %v233 = vmul.f32 %v209, 0.2
    %v234 = vmul.f32 %v212, 0.2
    %v235 = vmul.f32 %v217, 0.2
    %v236 = vmul.f32 %v220, 0.2
    %v237 = vmul.f32 %v225, 0.2
    %v238 = vmul.f32 %v228, 0.2
    %v239 = vmax.f32 %v201, %v231
    %v240 = vmax.f32 %v204, %v232
    %v241 = vmax.f32 %v209, %v233
    %v242 = vmax.f32 %v212, %v234
    %v243 = vmax.f32 %v217, %v235
    %v244 = vmax.f32 %v220, %v236
    %v245 = vmax.f32 %v225, %v237
    %v246 = vmax.f32 %v228, %v238
    %v247 = vmul.f32 %v239, %v239
    %v248 = vmul.f32 %v240, %v240
    %v249 = vmul.f32 %v241, %v241
    %v250 = vmul.f32 %v242, %v242
    %v251 = vmul.f32 %v243, %v243
    %v252 = vmul.f32 %v244, %v244
    %v253 = vmul.f32 %v245, %v245
    %v254 = vmul.f32 %v246, %v246
    %v255 = vsel %vm153, %v247, 0.0
    %256 = vadd.xlane.f32.xlu0 %v255
    %v257 = vpop.xlane.xlu0 %256
    %v258 = vsel %vm153, %v248, 0.0
    %259 = vadd.xlane.f32.xlu0 %v258
    %v260 = vpop.xlane.xlu0 %259
    %v261 = vsel %vm153, %v249, 0.0
    %262 = vadd.xlane.f32.xlu0 %v261
    %v263 = vpop.xlane.xlu0 %262
    %v264 = vsel %vm153, %v250, 0.0
    %265 = vadd.xlane.f32.xlu0 %v264
    %v266 = vpop.xlane.xlu0 %265
    %v267 = vsel %vm153, %v251, 0.0
    %268 = vadd.xlane.f32.xlu0 %v267
    %v269 = vpop.xlane.xlu0 %268
    %v270 = vsel %vm153, %v252, 0.0
    %271 = vadd.xlane.f32.xlu0 %v270
    %v272 = vpop.xlane.xlu0 %271
    %v273 = vsel %vm153, %v253, 0.0
    %274 = vadd.xlane.f32.xlu0 %v273
    %v275 = vpop.xlane.xlu0 %274
    %v276 = vsel %vm153, %v254, 0.0
    %277 = vadd.xlane.f32.xlu0 %v276
    %v278 = vpop.xlane.xlu0 %277
    %v279 = vmax.f32 %v257, 1e-24
    %v280 = vmax.f32 %v260, 1e-24
    %v281 = vmax.f32 %v263, 1e-24
    %v282 = vmax.f32 %v266, 1e-24
    %v283 = vmax.f32 %v269, 1e-24
    %v284 = vmax.f32 %v272, 1e-24
    %v285 = vmax.f32 %v275, 1e-24
    %v286 = vmax.f32 %v278, 1e-24
    %v287 = vrsqrt.pop %v279
    %v288 = vrsqrt.pop %v280
    %v289 = vrsqrt.pop %v281
    %v290 = vrsqrt.pop %v282
    %v291 = vrsqrt.pop %v283
    %v292 = vrsqrt.pop %v284
    %v293 = vrsqrt.pop %v285
    %v294 = vrsqrt.pop %v286
    %v295 = vmul.f32 %v239, %v287
    %v296 = vmul.f32 %v240, %v288
    %v297 = vmul.f32 %v241, %v289
    %v298 = vmul.f32 %v242, %v290
    %v299 = vmul.f32 %v243, %v291
    %v300 = vmul.f32 %v244, %v292
    %v301 = vmul.f32 %v245, %v293
    %v302 = vmul.f32 %v246, %v294
    %v303 = vld [vmem:[%s1 + $0x58] sm:$0xff]
    %v304 = vld [vmem:[%s1 + $0x60] sm:$0xff]
    %v305 = vld [vmem:[%s1 + $0x68] sm:$0x1]
    %v306 = vpack.c.bf16 %v240, %v239
    %v307 = vpack.c.bf16 %v242, %v241
    %v308 = vpack.c.bf16 %v244, %v243
    %v309 = vpack.c.bf16 %v246, %v245
    %310 = vmatprep.subr.bf16.mxu0 0
    %311 = vmatpush1.bf16.msra.mxu0 %v306
    %312 = vmatprep.subr.bf16.mxu0 0
    %313 = vmatpush1.bf16.msra.mxu0 %v307
    %314 = vmatprep.subr.bf16.mxu0 0
    %315 = vmatpush1.bf16.msra.mxu0 %v308
    %316 = vmatprep.subr.bf16.mxu0 0
    %317 = vmatpush1.bf16.msra.mxu0 %v309
    %318 = vmatprep.subr.bf16.mxu0 0
    %319 = vmatpush1.bf16.msra.mxu0 0
    %320 = vmatprep.subr.bf16.mxu0 0
    %321 = vmatpush1.bf16.msra.mxu0 0
    %322 = vmatprep.subr.bf16.mxu0 0
    %323 = vmatpush1.bf16.msra.mxu0 0
    %324 = vmatprep.subr.bf16.mxu0 0
    %325 = vmatpush1.bf16.msra.mxu0 0
    %326 = vmatprep.subr.bf16.mxu0 0
    %327 = vmatpush1.bf16.msra.mxu0 0
    %328 = vmatprep.subr.bf16.mxu0 0
    %329 = vmatpush1.bf16.msra.mxu0 0
    %330 = vmatprep.subr.bf16.mxu0 0
    %331 = vmatpush1.bf16.msra.mxu0 0
    %332 = vmatprep.subr.bf16.mxu0 0
    %333 = vmatpush1.bf16.msra.mxu0 0
    %334 = vmatprep.subr.bf16.mxu0 0
    %335 = vmatpush1.bf16.msra.mxu0 0
    %336 = vmatprep.subr.bf16.mxu0 0
    %337 = vmatpush1.bf16.msra.mxu0 0
    %338 = vmatprep.subr.bf16.mxu0 0
    %339 = vmatpush1.bf16.msra.mxu0 0
    %340 = vmatprep.subr.bf16.mxu0 0
    %341 = vmatpush1.bf16.msra.mxu0 0
    %342 = vmatprep.mubr.bf16.mxu0 0
    %343 = vmatmul.mubr.bf16.gmra.mrb[0].mxu0 %v68
    %v344 = vpop.f32.mrb[0].mxu0
    %v345 = vadd.f32 0.0, %v344
    %v346 = vpop.f32.mrb[0].mxu0
    %v347 = vpop.f32.mrb[0].mxu0
    %v348 = vadd.f32 0.0, %v347
    %v349 = vpop.f32.mrb[0].mxu0
    %350 = vmatprep.mubr.bf16.mxu0 0
    %351 = vmatmul.mubr.bf16.gmra.mrb[0].mxu0 %v71
    %v352 = vpop.f32.mrb[0].mxu0
    %v353 = vadd.f32 0.0, %v352
    %v354 = vpop.f32.mrb[0].mxu0
    %v355 = vpop.f32.mrb[0].mxu0
    %v356 = vadd.f32 0.0, %v355
    %v357 = vpop.f32.mrb[0].mxu0
    %358 = vmatprep.mubr.bf16.mxu0 0
    %359 = vmatmul.mubr.bf16.gmra.mrb[0].mxu0 %v74
    %v360 = vpop.f32.mrb[0].mxu0
    %v361 = vadd.f32 0.0, %v360
    %v362 = vpop.f32.mrb[0].mxu0
    %v363 = vpop.f32.mrb[0].mxu0
    %v364 = vadd.f32 0.0, %v363
    %v365 = vpop.f32.mrb[0].mxu0
    %366 = vmatprep.mubr.bf16.mxu0 0
    %367 = vmatmul.mubr.bf16.gmra.mrb[0].mxu0 %v77
    %v368 = vpop.f32.mrb[0].mxu0
    %v369 = vadd.f32 0.0, %v368
    %v370 = vpop.f32.mrb[0].mxu0
    %v371 = vpop.f32.mrb[0].mxu0
    %v372 = vadd.f32 0.0, %v371
    %v373 = vpop.f32.mrb[0].mxu0
    %374 = vdwg.mxu0
    %v375 = vpack.c.bf16 %v348, %v345
    %v376 = vpack.c.bf16 %v356, %v353
    %v377 = vpack.c.bf16 %v364, %v361
    %v378 = vpack.c.bf16 %v372, %v369
    %v379 = vpack.c.bf16 %v304, %v303
    %v380 = vlaneseq
    %v381 = vshrl.u32 %v380, 7
    %v382 = vsub.s32 0, %v381
    %v383 = vrot.slane %v305, %v382
    %v385 = vsel %vm153, %v375, 0
    %v388 = vsel %vm153, %v376, 0
    %v391 = vsel %vm153, %v377, 0
    %v394 = vsel %vm153, %v378, 0
    %396 = vmatprep.subr.bf16.mxu0 0
    %397 = vmatpush1.bf16.msra.mxu0 %v379
    %398 = vmatprep.subr.bf16.mxu0 0
    %399 = vmatpush1.bf16.msra.mxu0 0
    %400 = vmatprep.subr.bf16.mxu0 0
    %401 = vmatpush1.bf16.msra.mxu0 0
    %402 = vmatprep.subr.bf16.mxu0 0
    %403 = vmatpush1.bf16.msra.mxu0 0
    %404 = vmatprep.subr.bf16.mxu0 0
    %405 = vmatpush1.bf16.msra.mxu0 0
    %406 = vmatprep.subr.bf16.mxu0 0
    %407 = vmatpush1.bf16.msra.mxu0 0
    %408 = vmatprep.subr.bf16.mxu0 0
    %409 = vmatpush1.bf16.msra.mxu0 0
    %410 = vmatprep.subr.bf16.mxu0 0
    %411 = vmatpush1.bf16.msra.mxu0 0
    %412 = vmatprep.subr.bf16.mxu0 0
    %413 = vmatpush1.bf16.msra.mxu0 0
    %414 = vmatprep.subr.bf16.mxu0 0
    %415 = vmatpush1.bf16.msra.mxu0 0
    %416 = vmatprep.subr.bf16.mxu0 0
    %417 = vmatpush1.bf16.msra.mxu0 0
    %418 = vmatprep.subr.bf16.mxu0 0
    %419 = vmatpush1.bf16.msra.mxu0 0
    %420 = vmatprep.subr.bf16.mxu0 0
    %421 = vmatpush1.bf16.msra.mxu0 0
    %422 = vmatprep.subr.bf16.mxu0 0
    %423 = vmatpush1.bf16.msra.mxu0 0
    %424 = vmatprep.subr.bf16.mxu0 0
    %425 = vmatpush1.bf16.msra.mxu0 0
    %426 = vmatprep.subr.bf16.mxu0 0
    %427 = vmatpush1.bf16.msra.mxu0 0
    %428 = vmatprep.mubr.bf16.mxu0 0
    %429 = vmatmul.mubr.bf16.gmra.mrb[0].mxu0 %v385
    %v430 = vpop.f32.mrb[0].mxu0
    %v431 = vadd.f32 %v383, %v430
    %v432 = vpop.f32.mrb[0].mxu0
    %v433 = vpop.f32.mrb[0].mxu0
    %v434 = vadd.f32 %v383, %v433
    %v435 = vpop.f32.mrb[0].mxu0
    %436 = vmatprep.mubr.bf16.mxu0 0
    %437 = vmatmul.mubr.bf16.gmra.mrb[0].mxu0 %v388
    %v438 = vpop.f32.mrb[0].mxu0
    %v439 = vadd.f32 %v383, %v438
    %v440 = vpop.f32.mrb[0].mxu0
    %v441 = vpop.f32.mrb[0].mxu0
    %v442 = vadd.f32 %v383, %v441
    %v443 = vpop.f32.mrb[0].mxu0
    %444 = vmatprep.mubr.bf16.mxu0 0
    %445 = vmatmul.mubr.bf16.gmra.mrb[0].mxu0 %v391
    %v446 = vpop.f32.mrb[0].mxu0
    %v447 = vadd.f32 %v383, %v446
    %v448 = vpop.f32.mrb[0].mxu0
    %v449 = vpop.f32.mrb[0].mxu0
    %v450 = vadd.f32 %v383, %v449
    %v451 = vpop.f32.mrb[0].mxu0
    %452 = vmatprep.mubr.bf16.mxu0 0
    %453 = vmatmul.mubr.bf16.gmra.mrb[0].mxu0 %v394
    %v454 = vpop.f32.mrb[0].mxu0
    %v455 = vadd.f32 %v383, %v454
    %v456 = vpop.f32.mrb[0].mxu0
    %v457 = vpop.f32.mrb[0].mxu0
    %v458 = vadd.f32 %v383, %v457
    %v459 = vpop.f32.mrb[0].mxu0
    %460 = vdwg.mxu0
    %v461 = vmul.f32 %v431, 0.2
    %v462 = vmul.f32 %v434, 0.2
    %v463 = vmul.f32 %v439, 0.2
    %v464 = vmul.f32 %v442, 0.2
    %v465 = vmul.f32 %v447, 0.2
    %v466 = vmul.f32 %v450, 0.2
    %v467 = vmul.f32 %v455, 0.2
    %v468 = vmul.f32 %v458, 0.2
    %v469 = vmax.f32 %v431, %v461
    %v470 = vmax.f32 %v434, %v462
    %v471 = vmax.f32 %v439, %v463
    %v472 = vmax.f32 %v442, %v464
    %v473 = vmax.f32 %v447, %v465
    %v474 = vmax.f32 %v450, %v466
    %v475 = vmax.f32 %v455, %v467
    %v476 = vmax.f32 %v458, %v468
    %v477 = vmul.f32 %v469, %v469
    %v478 = vmul.f32 %v470, %v470
    %v479 = vmul.f32 %v471, %v471
    %v480 = vmul.f32 %v472, %v472
    %v481 = vmul.f32 %v473, %v473
    %v482 = vmul.f32 %v474, %v474
    %v483 = vmul.f32 %v475, %v475
    %v484 = vmul.f32 %v476, %v476
    %v485 = vsel %vm153, %v477, 0.0
    %486 = vadd.xlane.f32.xlu0 %v485
    %v487 = vpop.xlane.xlu0 %486
    %v488 = vsel %vm153, %v478, 0.0
    %489 = vadd.xlane.f32.xlu0 %v488
    %v490 = vpop.xlane.xlu0 %489
    %v491 = vsel %vm153, %v479, 0.0
    %492 = vadd.xlane.f32.xlu0 %v491
    %v493 = vpop.xlane.xlu0 %492
    %v494 = vsel %vm153, %v480, 0.0
    %495 = vadd.xlane.f32.xlu0 %v494
    %v496 = vpop.xlane.xlu0 %495
    %v497 = vsel %vm153, %v481, 0.0
    %498 = vadd.xlane.f32.xlu0 %v497
    %v499 = vpop.xlane.xlu0 %498
    %v500 = vsel %vm153, %v482, 0.0
    %501 = vadd.xlane.f32.xlu0 %v500
    %v502 = vpop.xlane.xlu0 %501
    %v503 = vsel %vm153, %v483, 0.0
    %504 = vadd.xlane.f32.xlu0 %v503
    %v505 = vpop.xlane.xlu0 %504
    %v506 = vsel %vm153, %v484, 0.0
    %507 = vadd.xlane.f32.xlu0 %v506
    %v508 = vpop.xlane.xlu0 %507
    %v509 = vmax.f32 %v487, 1e-24
    %v510 = vmax.f32 %v490, 1e-24
    %v511 = vmax.f32 %v493, 1e-24
    %v512 = vmax.f32 %v496, 1e-24
    %v513 = vmax.f32 %v499, 1e-24
    %v514 = vmax.f32 %v502, 1e-24
    %v515 = vmax.f32 %v505, 1e-24
    %v516 = vmax.f32 %v508, 1e-24
    %v517 = vrsqrt.pop %v509
    %v518 = vrsqrt.pop %v510
    %v519 = vrsqrt.pop %v511
    %v520 = vrsqrt.pop %v512
    %v521 = vrsqrt.pop %v513
    %v522 = vrsqrt.pop %v514
    %v523 = vrsqrt.pop %v515
    %v524 = vrsqrt.pop %v516
    %v525 = vmul.f32 %v469, %v517
    %v526 = vmul.f32 %v470, %v518
    %v527 = vmul.f32 %v471, %v519
    %v528 = vmul.f32 %v472, %v520
    %v529 = vmul.f32 %v473, %v521
    %v530 = vmul.f32 %v474, %v522
    %v531 = vmul.f32 %v475, %v523
    %v532 = vmul.f32 %v476, %v524
    %541 = vrot.lane.b32.xlu0 %v295, 16
    %v542 = vpop.permute.xlu0 %541
    %543 = vrot.lane.b32.xlu0 %v296, 16
    %v544 = vpop.permute.xlu0 %543
    %545 = vrot.lane.b32.xlu0 %v297, 16
    %v546 = vpop.permute.xlu0 %545
    %547 = vrot.lane.b32.xlu0 %v298, 16
    %v548 = vpop.permute.xlu0 %547
    %549 = vrot.lane.b32.xlu0 %v299, 16
    %v550 = vpop.permute.xlu0 %549
    %551 = vrot.lane.b32.xlu0 %v300, 16
    %v552 = vpop.permute.xlu0 %551
    %553 = vrot.lane.b32.xlu0 %v301, 16
    %v554 = vpop.permute.xlu0 %553
    %555 = vrot.lane.b32.xlu0 %v302, 16
    %v556 = vpop.permute.xlu0 %555
    %573 = vrot.lane.b32.xlu0 %v525, 32
    %v574 = vpop.permute.xlu0 %573
    %575 = vrot.lane.b32.xlu0 %v526, 32
    %v576 = vpop.permute.xlu0 %575
    %577 = vrot.lane.b32.xlu0 %v527, 32
    %v578 = vpop.permute.xlu0 %577
    %579 = vrot.lane.b32.xlu0 %v528, 32
    %v580 = vpop.permute.xlu0 %579
    %581 = vrot.lane.b32.xlu0 %v529, 32
    %v582 = vpop.permute.xlu0 %581
    %583 = vrot.lane.b32.xlu0 %v530, 32
    %v584 = vpop.permute.xlu0 %583
    %585 = vrot.lane.b32.xlu0 %v531, 32
    %v586 = vpop.permute.xlu0 %585
    %587 = vrot.lane.b32.xlu0 %v532, 32
    %v588 = vpop.permute.xlu0 %587
    %v597 = vsel %vm153, %v31, %v542
    %v598 = vsel %vm153, %v32, %v544
    %v599 = vsel %vm153, %v33, %v546
    %v600 = vsel %vm153, %v34, %v548
    %v601 = vsel %vm153, %v35, %v550
    %v602 = vsel %vm153, %v36, %v552
    %v603 = vsel %vm153, %v37, %v554
    %v604 = vsel %vm153, %v38, %v556
    %vm605 = vcmask 261120
    %v606 = vsel %vm605, %v597, %v574
    %v607 = vsel %vm605, %v598, %v576
    %v608 = vsel %vm605, %v599, %v578
    %v609 = vsel %vm605, %v600, %v580
    %v610 = vsel %vm605, %v601, %v582
    %v611 = vsel %vm605, %v602, %v584
    %v612 = vsel %vm605, %v603, %v586
    %v613 = vsel %vm605, %v604, %v588
    %v614 = vlaneseq
    %v615 = vand.u32 %v614, 127
    %v616 = vld [vmem:[%s2] sm:$0xff]
    %v617 = vld [vmem:[%s2 + $0x8] sm:$0xff]
    %v618 = vld [vmem:[%s2 + $0x10] sm:$0xff]
    %v619 = vld [vmem:[%s2 + $0x18] sm:$0xff]
    %v620 = vld [vmem:[%s2 + $0x20] sm:$0xff]
    %621 = vset.pattern.permute.xlu0 0
    %622 = vperm.xlu0 %621, %v616
    %v623 = vpop.permute.xlu0 %622
    %624 = vset.pattern.permute.xlu0 0
    %625 = vperm.xlu0 %624, %v617
    %v626 = vpop.permute.xlu0 %625
    %627 = vset.pattern.permute.xlu0 0
    %628 = vperm.xlu0 %627, %v618
    %v629 = vpop.permute.xlu0 %628
    %630 = vset.pattern.permute.xlu0 0
    %631 = vperm.xlu0 %630, %v619
    %v632 = vpop.permute.xlu0 %631
    %633 = vset.pattern.permute.xlu0 0
    %634 = vperm.xlu0 %633, %v620
    %v635 = vpop.permute.xlu0 %634
    %vm636 = vcmp.eq.s32.totalorder %v623, %v615
    %vm637 = vcmp.eq.s32.totalorder %v626, %v615
    %vm638 = vcmp.eq.s32.totalorder %v629, %v615
    %vm639 = vcmp.eq.s32.totalorder %v632, %v615
    %vm640 = vcmp.eq.s32.totalorder %v635, %v615
    %v641 = vsel %vm636, 1, 0
    %v642 = vsel %vm637, 1, 0
    %v643 = vsel %vm638, 1, 0
    %v644 = vsel %vm639, 1, 0
    %v645 = vsel %vm640, 1, 0
    %v646 = vcvt.s32.f32 %v641
    %v647 = vcvt.s32.f32 %v642
    %v648 = vcvt.s32.f32 %v643
    %v649 = vcvt.s32.f32 %v644
    %v650 = vcvt.s32.f32 %v645
    %v652 = vsel %vm66, %v646, 0
    %v655 = vsel %vm66, %v647, 0
    %v658 = vsel %vm66, %v648, 0
    %v661 = vsel %vm66, %v649, 0
    %v664 = vsel %vm66, %v650, 0
    %666 = vmatprep.subr.mxu0 0.0
    %v667 = vand.u32 %v606, 4294901760
    %668 = vmatpush1.msra.mxu0 %v667
    %669 = vmatprep.subr.mxu0 0.0
    %v670 = vand.u32 %v607, 4294901760
    %671 = vmatpush1.msra.mxu0 %v670
    %672 = vmatprep.subr.mxu0 0.0
    %v673 = vand.u32 %v608, 4294901760
    %674 = vmatpush1.msra.mxu0 %v673
    %675 = vmatprep.subr.mxu0 0.0
    %v676 = vand.u32 %v609, 4294901760
    %677 = vmatpush1.msra.mxu0 %v676
    %678 = vmatprep.subr.mxu0 0.0
    %v679 = vand.u32 %v610, 4294901760
    %680 = vmatpush1.msra.mxu0 %v679
    %681 = vmatprep.subr.mxu0 0.0
    %v682 = vand.u32 %v611, 4294901760
    %683 = vmatpush1.msra.mxu0 %v682
    %684 = vmatprep.subr.mxu0 0.0
    %v685 = vand.u32 %v612, 4294901760
    %686 = vmatpush1.msra.mxu0 %v685
    %687 = vmatprep.subr.mxu0 0.0
    %v688 = vand.u32 %v613, 4294901760
    %689 = vmatpush1.msra.mxu0 %v688
    %690 = vmatprep.subr.mxu0 0.0
    %691 = vmatpush1.msra.mxu0 0.0
    %692 = vmatprep.subr.mxu0 0.0
    %693 = vmatpush1.msra.mxu0 0.0
    %694 = vmatprep.subr.mxu0 0.0
    %695 = vmatpush1.msra.mxu0 0.0
    %696 = vmatprep.subr.mxu0 0.0
    %697 = vmatpush1.msra.mxu0 0.0
    %698 = vmatprep.subr.mxu0 0.0
    %699 = vmatpush1.msra.mxu0 0.0
    %700 = vmatprep.subr.mxu0 0.0
    %701 = vmatpush1.msra.mxu0 0.0
    %702 = vmatprep.subr.mxu0 0.0
    %703 = vmatpush1.msra.mxu0 0.0
    %704 = vmatprep.subr.mxu0 0.0
    %705 = vmatpush1.msra.mxu0 0.0
    %706 = vmatprep.subr.mxu0 0.0
    %707 = vmatpush1.msra.mxu0 0.0
    %708 = vmatprep.subr.mxu0 0.0
    %709 = vmatpush1.msra.mxu0 0.0
    %710 = vmatprep.subr.mxu0 0.0
    %711 = vmatpush1.msra.mxu0 0.0
    %712 = vmatprep.subr.mxu0 0.0
    %713 = vmatpush1.msra.mxu0 0.0
    %714 = vmatprep.subr.mxu0 0.0
    %715 = vmatpush1.msra.mxu0 0.0
    %716 = vmatprep.subr.mxu0 0.0
    %717 = vmatpush1.msra.mxu0 0.0
    %718 = vmatprep.subr.mxu0 0.0
    %719 = vmatpush1.msra.mxu0 0.0
    %720 = vmatprep.subr.mxu0 0.0
    %721 = vmatpush1.msra.mxu0 0.0
    %722 = vmatprep.subr.mxu0 0.0
    %723 = vmatpush1.msra.mxu0 0.0
    %724 = vmatprep.subr.mxu0 0.0
    %725 = vmatpush1.msra.mxu0 0.0
    %726 = vmatprep.subr.mxu0 0.0
    %727 = vmatpush1.msra.mxu0 0.0
    %728 = vmatprep.subr.mxu0 0.0
    %729 = vmatpush1.msra.mxu0 0.0
    %730 = vmatprep.subr.mxu0 0.0
    %731 = vmatpush1.msra.mxu0 0.0
    %732 = vmatprep.subr.mxu0 0.0
    %733 = vmatpush1.msra.mxu0 0.0
    %734 = vmatprep.subr.mxu0 0.0
    %735 = vmatpush1.msra.mxu0 0.0
    %736 = vmatprep.subr.mxu0 0.0
    %737 = vmatpush1.msra.mxu0 0.0
    %738 = vmatprep.mubr.f32.mxu0 0.0
    %v739 = vand.u32 %v652, 4294901760
    %v740 = vsub.f32 %v652, %v739
    %v741 = vand.u32 %v740, 4294901760
    %v742 = vsub.f32 %v740, %v741
    %v743 = vand.u32 %v742, 4294901760
    %744 = vmatmul.mubr.f32.gmra.mrb[0].mxu0 %v743
    %v745 = vpop.f32.mrb[0].mxu0
    %v746 = vadd.f32 0.0, %v745
    %v747 = vpop.f32.mrb[0].mxu0
    %748 = vmatprep.mubr.f32.mxu0 0.0
    %v749 = vand.u32 %v655, 4294901760
    %v750 = vsub.f32 %v655, %v749
    %v751 = vand.u32 %v750, 4294901760
    %v752 = vsub.f32 %v750, %v751
    %v753 = vand.u32 %v752, 4294901760
    %754 = vmatmul.mubr.f32.gmra.mrb[0].mxu0 %v753
    %v755 = vpop.f32.mrb[0].mxu0
    %v756 = vadd.f32 0.0, %v755
    %v757 = vpop.f32.mrb[0].mxu0
    %758 = vmatprep.mubr.f32.mxu0 0.0
    %v759 = vand.u32 %v658, 4294901760
    %v760 = vsub.f32 %v658, %v759
    %v761 = vand.u32 %v760, 4294901760
    %v762 = vsub.f32 %v760, %v761
    %v763 = vand.u32 %v762, 4294901760
    %764 = vmatmul.mubr.f32.gmra.mrb[0].mxu0 %v763
    %v765 = vpop.f32.mrb[0].mxu0
    %v766 = vadd.f32 0.0, %v765
    %v767 = vpop.f32.mrb[0].mxu0
    %768 = vmatprep.mubr.f32.mxu0 0.0
    %v769 = vand.u32 %v661, 4294901760
    %v770 = vsub.f32 %v661, %v769
    %v771 = vand.u32 %v770, 4294901760
    %v772 = vsub.f32 %v770, %v771
    %v773 = vand.u32 %v772, 4294901760
    %774 = vmatmul.mubr.f32.gmra.mrb[0].mxu0 %v773
    %v775 = vpop.f32.mrb[0].mxu0
    %v776 = vadd.f32 0.0, %v775
    %v777 = vpop.f32.mrb[0].mxu0
    %778 = vmatprep.mubr.f32.mxu0 0.0
    %v779 = vand.u32 %v664, 4294901760
    %v780 = vsub.f32 %v664, %v779
    %v781 = vand.u32 %v780, 4294901760
    %v782 = vsub.f32 %v780, %v781
    %v783 = vand.u32 %v782, 4294901760
    %784 = vmatmul.mubr.f32.gmra.mrb[0].mxu0 %v783
    %v785 = vpop.f32.mrb[0].mxu0
    %v786 = vadd.f32 0.0, %v785
    %v787 = vpop.f32.mrb[0].mxu0
    %788 = vdwg.mxu0
    %789 = vmatprep.subr.mxu0 0.0
    %v790 = vand.u32 %v606, 4294901760
    %v791 = vsub.f32 %v606, %v790
    %v792 = vand.u32 %v791, 4294901760
    %v793 = vsub.f32 %v791, %v792
    %v794 = vand.u32 %v793, 4294901760
    %795 = vmatpush1.msra.mxu0 %v794
    %796 = vmatprep.subr.mxu0 0.0
    %v797 = vand.u32 %v607, 4294901760
    %v798 = vsub.f32 %v607, %v797
    %v799 = vand.u32 %v798, 4294901760
    %v800 = vsub.f32 %v798, %v799
    %v801 = vand.u32 %v800, 4294901760
    %802 = vmatpush1.msra.mxu0 %v801
    %803 = vmatprep.subr.mxu0 0.0
    %v804 = vand.u32 %v608, 4294901760
    %v805 = vsub.f32 %v608, %v804
    %v806 = vand.u32 %v805, 4294901760
    %v807 = vsub.f32 %v805, %v806
    %v808 = vand.u32 %v807, 4294901760
    %809 = vmatpush1.msra.mxu0 %v808
    %810 = vmatprep.subr.mxu0 0.0
    %v811 = vand.u32 %v609, 4294901760
    %v812 = vsub.f32 %v609, %v811
    %v813 = vand.u32 %v812, 4294901760
    %v814 = vsub.f32 %v812, %v813
    %v815 = vand.u32 %v814, 4294901760
    %816 = vmatpush1.msra.mxu0 %v815
    %817 = vmatprep.subr.mxu0 0.0
    %v818 = vand.u32 %v610, 4294901760
    %v819 = vsub.f32 %v610, %v818
    %v820 = vand.u32 %v819, 4294901760
    %v821 = vsub.f32 %v819, %v820
    %v822 = vand.u32 %v821, 4294901760
    %823 = vmatpush1.msra.mxu0 %v822
    %824 = vmatprep.subr.mxu0 0.0
    %v825 = vand.u32 %v611, 4294901760
    %v826 = vsub.f32 %v611, %v825
    %v827 = vand.u32 %v826, 4294901760
    %v828 = vsub.f32 %v826, %v827
    %v829 = vand.u32 %v828, 4294901760
    %830 = vmatpush1.msra.mxu0 %v829
    %831 = vmatprep.subr.mxu0 0.0
    %v832 = vand.u32 %v612, 4294901760
    %v833 = vsub.f32 %v612, %v832
    %v834 = vand.u32 %v833, 4294901760
    %v835 = vsub.f32 %v833, %v834
    %v836 = vand.u32 %v835, 4294901760
    %837 = vmatpush1.msra.mxu0 %v836
    %838 = vmatprep.subr.mxu0 0.0
    %v839 = vand.u32 %v613, 4294901760
    %v840 = vsub.f32 %v613, %v839
    %v841 = vand.u32 %v840, 4294901760
    %v842 = vsub.f32 %v840, %v841
    %v843 = vand.u32 %v842, 4294901760
    %844 = vmatpush1.msra.mxu0 %v843
    %845 = vmatprep.subr.mxu0 0.0
    %846 = vmatpush1.msra.mxu0 0.0
    %847 = vmatprep.subr.mxu0 0.0
    %848 = vmatpush1.msra.mxu0 0.0
    %849 = vmatprep.subr.mxu0 0.0
    %850 = vmatpush1.msra.mxu0 0.0
    %851 = vmatprep.subr.mxu0 0.0
    %852 = vmatpush1.msra.mxu0 0.0
    %853 = vmatprep.subr.mxu0 0.0
    %854 = vmatpush1.msra.mxu0 0.0
    %855 = vmatprep.subr.mxu0 0.0
    %856 = vmatpush1.msra.mxu0 0.0
    %857 = vmatprep.subr.mxu0 0.0
    %858 = vmatpush1.msra.mxu0 0.0
    %859 = vmatprep.subr.mxu0 0.0
    %860 = vmatpush1.msra.mxu0 0.0
    %861 = vmatprep.subr.mxu0 0.0
    %862 = vmatpush1.msra.mxu0 0.0
    %863 = vmatprep.subr.mxu0 0.0
    %864 = vmatpush1.msra.mxu0 0.0
    %865 = vmatprep.subr.mxu0 0.0
    %866 = vmatpush1.msra.mxu0 0.0
    %867 = vmatprep.subr.mxu0 0.0
    %868 = vmatpush1.msra.mxu0 0.0
    %869 = vmatprep.subr.mxu0 0.0
    %870 = vmatpush1.msra.mxu0 0.0
    %871 = vmatprep.subr.mxu0 0.0
    %872 = vmatpush1.msra.mxu0 0.0
    %873 = vmatprep.subr.mxu0 0.0
    %874 = vmatpush1.msra.mxu0 0.0
    %875 = vmatprep.subr.mxu0 0.0
    %876 = vmatpush1.msra.mxu0 0.0
    %877 = vmatprep.subr.mxu0 0.0
    %878 = vmatpush1.msra.mxu0 0.0
    %879 = vmatprep.subr.mxu0 0.0
    %880 = vmatpush1.msra.mxu0 0.0
    %881 = vmatprep.subr.mxu0 0.0
    %882 = vmatpush1.msra.mxu0 0.0
    %883 = vmatprep.subr.mxu0 0.0
    %884 = vmatpush1.msra.mxu0 0.0
    %885 = vmatprep.subr.mxu0 0.0
    %886 = vmatpush1.msra.mxu0 0.0
    %887 = vmatprep.subr.mxu0 0.0
    %888 = vmatpush1.msra.mxu0 0.0
    %889 = vmatprep.subr.mxu0 0.0
    %890 = vmatpush1.msra.mxu0 0.0
    %891 = vmatprep.subr.mxu0 0.0
    %892 = vmatpush1.msra.mxu0 0.0
    %893 = vmatprep.mubr.f32.mxu0 0.0
    %v894 = vand.u32 %v652, 4294901760
    %895 = vmatmul.mubr.f32.gmra.mrb[0].mxu0 %v894
    %v896 = vpop.f32.mrb[0].mxu0
    %v897 = vadd.f32 %v746, %v896
    %v898 = vpop.f32.mrb[0].mxu0
    %899 = vmatprep.mubr.f32.mxu0 0.0
    %v900 = vand.u32 %v655, 4294901760
    %901 = vmatmul.mubr.f32.gmra.mrb[0].mxu0 %v900
    %v902 = vpop.f32.mrb[0].mxu0
    %v903 = vadd.f32 %v756, %v902
    %v904 = vpop.f32.mrb[0].mxu0
    %905 = vmatprep.mubr.f32.mxu0 0.0
    %v906 = vand.u32 %v658, 4294901760
    %907 = vmatmul.mubr.f32.gmra.mrb[0].mxu0 %v906
    %v908 = vpop.f32.mrb[0].mxu0
    %v909 = vadd.f32 %v766, %v908
    %v910 = vpop.f32.mrb[0].mxu0
    %911 = vmatprep.mubr.f32.mxu0 0.0
    %v912 = vand.u32 %v661, 4294901760
    %913 = vmatmul.mubr.f32.gmra.mrb[0].mxu0 %v912
    %v914 = vpop.f32.mrb[0].mxu0
    %v915 = vadd.f32 %v776, %v914
    %v916 = vpop.f32.mrb[0].mxu0
    %917 = vmatprep.mubr.f32.mxu0 0.0
    %v918 = vand.u32 %v664, 4294901760
    %919 = vmatmul.mubr.f32.gmra.mrb[0].mxu0 %v918
    %v920 = vpop.f32.mrb[0].mxu0
    %v921 = vadd.f32 %v786, %v920
    %v922 = vpop.f32.mrb[0].mxu0
    %923 = vdwg.mxu0
    %924 = vmatprep.subr.mxu0 0.0
    %v925 = vand.u32 %v606, 4294901760
    %v926 = vsub.f32 %v606, %v925
    %927 = vmatpush1.msra.mxu0 %v926
    %928 = vmatprep.subr.mxu0 0.0
    %v929 = vand.u32 %v607, 4294901760
    %v930 = vsub.f32 %v607, %v929
    %931 = vmatpush1.msra.mxu0 %v930
    %932 = vmatprep.subr.mxu0 0.0
    %v933 = vand.u32 %v608, 4294901760
    %v934 = vsub.f32 %v608, %v933
    %935 = vmatpush1.msra.mxu0 %v934
    %936 = vmatprep.subr.mxu0 0.0
    %v937 = vand.u32 %v609, 4294901760
    %v938 = vsub.f32 %v609, %v937
    %939 = vmatpush1.msra.mxu0 %v938
    %940 = vmatprep.subr.mxu0 0.0
    %v941 = vand.u32 %v610, 4294901760
    %v942 = vsub.f32 %v610, %v941
    %943 = vmatpush1.msra.mxu0 %v942
    %944 = vmatprep.subr.mxu0 0.0
    %v945 = vand.u32 %v611, 4294901760
    %v946 = vsub.f32 %v611, %v945
    %947 = vmatpush1.msra.mxu0 %v946
    %948 = vmatprep.subr.mxu0 0.0
    %v949 = vand.u32 %v612, 4294901760
    %v950 = vsub.f32 %v612, %v949
    %951 = vmatpush1.msra.mxu0 %v950
    %952 = vmatprep.subr.mxu0 0.0
    %v953 = vand.u32 %v613, 4294901760
    %v954 = vsub.f32 %v613, %v953
    %955 = vmatpush1.msra.mxu0 %v954
    %956 = vmatprep.subr.mxu0 0.0
    %957 = vmatpush1.msra.mxu0 0.0
    %958 = vmatprep.subr.mxu0 0.0
    %959 = vmatpush1.msra.mxu0 0.0
    %960 = vmatprep.subr.mxu0 0.0
    %961 = vmatpush1.msra.mxu0 0.0
    %962 = vmatprep.subr.mxu0 0.0
    %963 = vmatpush1.msra.mxu0 0.0
    %964 = vmatprep.subr.mxu0 0.0
    %965 = vmatpush1.msra.mxu0 0.0
    %966 = vmatprep.subr.mxu0 0.0
    %967 = vmatpush1.msra.mxu0 0.0
    %968 = vmatprep.subr.mxu0 0.0
    %969 = vmatpush1.msra.mxu0 0.0
    %970 = vmatprep.subr.mxu0 0.0
    %971 = vmatpush1.msra.mxu0 0.0
    %972 = vmatprep.subr.mxu0 0.0
    %973 = vmatpush1.msra.mxu0 0.0
    %974 = vmatprep.subr.mxu0 0.0
    %975 = vmatpush1.msra.mxu0 0.0
    %976 = vmatprep.subr.mxu0 0.0
    %977 = vmatpush1.msra.mxu0 0.0
    %978 = vmatprep.subr.mxu0 0.0
    %979 = vmatpush1.msra.mxu0 0.0
    %980 = vmatprep.subr.mxu0 0.0
    %981 = vmatpush1.msra.mxu0 0.0
    %982 = vmatprep.subr.mxu0 0.0
    %983 = vmatpush1.msra.mxu0 0.0
    %984 = vmatprep.subr.mxu0 0.0
    %985 = vmatpush1.msra.mxu0 0.0
    %986 = vmatprep.subr.mxu0 0.0
    %987 = vmatpush1.msra.mxu0 0.0
    %988 = vmatprep.subr.mxu0 0.0
    %989 = vmatpush1.msra.mxu0 0.0
    %990 = vmatprep.subr.mxu0 0.0
    %991 = vmatpush1.msra.mxu0 0.0
    %992 = vmatprep.subr.mxu0 0.0
    %993 = vmatpush1.msra.mxu0 0.0
    %994 = vmatprep.subr.mxu0 0.0
    %995 = vmatpush1.msra.mxu0 0.0
    %996 = vmatprep.subr.mxu0 0.0
    %997 = vmatpush1.msra.mxu0 0.0
    %998 = vmatprep.subr.mxu0 0.0
    %999 = vmatpush1.msra.mxu0 0.0
    %1000 = vmatprep.subr.mxu0 0.0
    %1001 = vmatpush1.msra.mxu0 0.0
    %1002 = vmatprep.subr.mxu0 0.0
    %1003 = vmatpush1.msra.mxu0 0.0
    %1004 = vmatprep.mubr.f32.mxu0 0.0
    %v1005 = vand.u32 %v652, 4294901760
    %v1006 = vsub.f32 %v652, %v1005
    %1007 = vmatmul.mubr.f32.gmra.mrb[0].mxu0 %v1006
    %v1008 = vpop.f32.mrb[0].mxu0
    %v1009 = vadd.f32 %v897, %v1008
    %v1010 = vpop.f32.mrb[0].mxu0
    %1011 = vmatprep.mubr.f32.mxu0 0.0
    %v1012 = vand.u32 %v655, 4294901760
    %v1013 = vsub.f32 %v655, %v1012
    %1014 = vmatmul.mubr.f32.gmra.mrb[0].mxu0 %v1013
    %v1015 = vpop.f32.mrb[0].mxu0
    %v1016 = vadd.f32 %v903, %v1015
    %v1017 = vpop.f32.mrb[0].mxu0
    %1018 = vmatprep.mubr.f32.mxu0 0.0
    %v1019 = vand.u32 %v658, 4294901760
    %v1020 = vsub.f32 %v658, %v1019
    %1021 = vmatmul.mubr.f32.gmra.mrb[0].mxu0 %v1020
    %v1022 = vpop.f32.mrb[0].mxu0
    %v1023 = vadd.f32 %v909, %v1022
    %v1024 = vpop.f32.mrb[0].mxu0
    %1025 = vmatprep.mubr.f32.mxu0 0.0
    %v1026 = vand.u32 %v661, 4294901760
    %v1027 = vsub.f32 %v661, %v1026
    %1028 = vmatmul.mubr.f32.gmra.mrb[0].mxu0 %v1027
    %v1029 = vpop.f32.mrb[0].mxu0
    %v1030 = vadd.f32 %v915, %v1029
    %v1031 = vpop.f32.mrb[0].mxu0
    %1032 = vmatprep.mubr.f32.mxu0 0.0
    %v1033 = vand.u32 %v664, 4294901760
    %v1034 = vsub.f32 %v664, %v1033
    %1035 = vmatmul.mubr.f32.gmra.mrb[0].mxu0 %v1034
    %v1036 = vpop.f32.mrb[0].mxu0
    %v1037 = vadd.f32 %v921, %v1036
    %v1038 = vpop.f32.mrb[0].mxu0
    %1039 = vdwg.mxu0
    %1040 = vmatprep.subr.mxu0 0.0
    %v1041 = vand.u32 %v606, 4294901760
    %1042 = vmatpush1.msra.mxu0 %v1041
    %1043 = vmatprep.subr.mxu0 0.0
    %v1044 = vand.u32 %v607, 4294901760
    %1045 = vmatpush1.msra.mxu0 %v1044
    %1046 = vmatprep.subr.mxu0 0.0
    %v1047 = vand.u32 %v608, 4294901760
    %1048 = vmatpush1.msra.mxu0 %v1047
    %1049 = vmatprep.subr.mxu0 0.0
    %v1050 = vand.u32 %v609, 4294901760
    %1051 = vmatpush1.msra.mxu0 %v1050
    %1052 = vmatprep.subr.mxu0 0.0
    %v1053 = vand.u32 %v610, 4294901760
    %1054 = vmatpush1.msra.mxu0 %v1053
    %1055 = vmatprep.subr.mxu0 0.0
    %v1056 = vand.u32 %v611, 4294901760
    %1057 = vmatpush1.msra.mxu0 %v1056
    %1058 = vmatprep.subr.mxu0 0.0
    %v1059 = vand.u32 %v612, 4294901760
    %1060 = vmatpush1.msra.mxu0 %v1059
    %1061 = vmatprep.subr.mxu0 0.0
    %v1062 = vand.u32 %v613, 4294901760
    %1063 = vmatpush1.msra.mxu0 %v1062
    %1064 = vmatprep.subr.mxu0 0.0
    %1065 = vmatpush1.msra.mxu0 0.0
    %1066 = vmatprep.subr.mxu0 0.0
    %1067 = vmatpush1.msra.mxu0 0.0
    %1068 = vmatprep.subr.mxu0 0.0
    %1069 = vmatpush1.msra.mxu0 0.0
    %1070 = vmatprep.subr.mxu0 0.0
    %1071 = vmatpush1.msra.mxu0 0.0
    %1072 = vmatprep.subr.mxu0 0.0
    %1073 = vmatpush1.msra.mxu0 0.0
    %1074 = vmatprep.subr.mxu0 0.0
    %1075 = vmatpush1.msra.mxu0 0.0
    %1076 = vmatprep.subr.mxu0 0.0
    %1077 = vmatpush1.msra.mxu0 0.0
    %1078 = vmatprep.subr.mxu0 0.0
    %1079 = vmatpush1.msra.mxu0 0.0
    %1080 = vmatprep.subr.mxu0 0.0
    %1081 = vmatpush1.msra.mxu0 0.0
    %1082 = vmatprep.subr.mxu0 0.0
    %1083 = vmatpush1.msra.mxu0 0.0
    %1084 = vmatprep.subr.mxu0 0.0
    %1085 = vmatpush1.msra.mxu0 0.0
    %1086 = vmatprep.subr.mxu0 0.0
    %1087 = vmatpush1.msra.mxu0 0.0
    %1088 = vmatprep.subr.mxu0 0.0
    %1089 = vmatpush1.msra.mxu0 0.0
    %1090 = vmatprep.subr.mxu0 0.0
    %1091 = vmatpush1.msra.mxu0 0.0
    %1092 = vmatprep.subr.mxu0 0.0
    %1093 = vmatpush1.msra.mxu0 0.0
    %1094 = vmatprep.subr.mxu0 0.0
    %1095 = vmatpush1.msra.mxu0 0.0
    %1096 = vmatprep.subr.mxu0 0.0
    %1097 = vmatpush1.msra.mxu0 0.0
    %1098 = vmatprep.subr.mxu0 0.0
    %1099 = vmatpush1.msra.mxu0 0.0
    %1100 = vmatprep.subr.mxu0 0.0
    %1101 = vmatpush1.msra.mxu0 0.0
    %1102 = vmatprep.subr.mxu0 0.0
    %1103 = vmatpush1.msra.mxu0 0.0
    %1104 = vmatprep.subr.mxu0 0.0
    %1105 = vmatpush1.msra.mxu0 0.0
    %1106 = vmatprep.subr.mxu0 0.0
    %1107 = vmatpush1.msra.mxu0 0.0
    %1108 = vmatprep.subr.mxu0 0.0
    %1109 = vmatpush1.msra.mxu0 0.0
    %1110 = vmatprep.subr.mxu0 0.0
    %1111 = vmatpush1.msra.mxu0 0.0
    %1112 = vmatprep.mubr.f32.mxu0 0.0
    %v1113 = vand.u32 %v652, 4294901760
    %v1114 = vsub.f32 %v652, %v1113
    %v1115 = vand.u32 %v1114, 4294901760
    %1116 = vmatmul.mubr.f32.gmra.mrb[0].mxu0 %v1115
    %v1117 = vpop.f32.mrb[0].mxu0
    %v1118 = vadd.f32 %v1009, %v1117
    %v1119 = vpop.f32.mrb[0].mxu0
    %1120 = vmatprep.mubr.f32.mxu0 0.0
    %v1121 = vand.u32 %v655, 4294901760
    %v1122 = vsub.f32 %v655, %v1121
    %v1123 = vand.u32 %v1122, 4294901760
    %1124 = vmatmul.mubr.f32.gmra.mrb[0].mxu0 %v1123
    %v1125 = vpop.f32.mrb[0].mxu0
    %v1126 = vadd.f32 %v1016, %v1125
    %v1127 = vpop.f32.mrb[0].mxu0
    %1128 = vmatprep.mubr.f32.mxu0 0.0
    %v1129 = vand.u32 %v658, 4294901760
    %v1130 = vsub.f32 %v658, %v1129
    %v1131 = vand.u32 %v1130, 4294901760
    %1132 = vmatmul.mubr.f32.gmra.mrb[0].mxu0 %v1131
    %v1133 = vpop.f32.mrb[0].mxu0
    %v1134 = vadd.f32 %v1023, %v1133
    %v1135 = vpop.f32.mrb[0].mxu0
    %1136 = vmatprep.mubr.f32.mxu0 0.0
    %v1137 = vand.u32 %v661, 4294901760
    %v1138 = vsub.f32 %v661, %v1137
    %v1139 = vand.u32 %v1138, 4294901760
    %1140 = vmatmul.mubr.f32.gmra.mrb[0].mxu0 %v1139
    %v1141 = vpop.f32.mrb[0].mxu0
    %v1142 = vadd.f32 %v1030, %v1141
    %v1143 = vpop.f32.mrb[0].mxu0
    %1144 = vmatprep.mubr.f32.mxu0 0.0
    %v1145 = vand.u32 %v664, 4294901760
    %v1146 = vsub.f32 %v664, %v1145
    %v1147 = vand.u32 %v1146, 4294901760
    %1148 = vmatmul.mubr.f32.gmra.mrb[0].mxu0 %v1147
    %v1149 = vpop.f32.mrb[0].mxu0
    %v1150 = vadd.f32 %v1037, %v1149
    %v1151 = vpop.f32.mrb[0].mxu0
    %1152 = vdwg.mxu0
    %1153 = vmatprep.subr.mxu0 0.0
    %v1154 = vand.u32 %v606, 4294901760
    %v1155 = vsub.f32 %v606, %v1154
    %v1156 = vand.u32 %v1155, 4294901760
    %1157 = vmatpush1.msra.mxu0 %v1156
    %1158 = vmatprep.subr.mxu0 0.0
    %v1159 = vand.u32 %v607, 4294901760
    %v1160 = vsub.f32 %v607, %v1159
    %v1161 = vand.u32 %v1160, 4294901760
    %1162 = vmatpush1.msra.mxu0 %v1161
    %1163 = vmatprep.subr.mxu0 0.0
    %v1164 = vand.u32 %v608, 4294901760
    %v1165 = vsub.f32 %v608, %v1164
    %v1166 = vand.u32 %v1165, 4294901760
    %1167 = vmatpush1.msra.mxu0 %v1166
    %1168 = vmatprep.subr.mxu0 0.0
    %v1169 = vand.u32 %v609, 4294901760
    %v1170 = vsub.f32 %v609, %v1169
    %v1171 = vand.u32 %v1170, 4294901760
    %1172 = vmatpush1.msra.mxu0 %v1171
    %1173 = vmatprep.subr.mxu0 0.0
    %v1174 = vand.u32 %v610, 4294901760
    %v1175 = vsub.f32 %v610, %v1174
    %v1176 = vand.u32 %v1175, 4294901760
    %1177 = vmatpush1.msra.mxu0 %v1176
    %1178 = vmatprep.subr.mxu0 0.0
    %v1179 = vand.u32 %v611, 4294901760
    %v1180 = vsub.f32 %v611, %v1179
    %v1181 = vand.u32 %v1180, 4294901760
    %1182 = vmatpush1.msra.mxu0 %v1181
    %1183 = vmatprep.subr.mxu0 0.0
    %v1184 = vand.u32 %v612, 4294901760
    %v1185 = vsub.f32 %v612, %v1184
    %v1186 = vand.u32 %v1185, 4294901760
    %1187 = vmatpush1.msra.mxu0 %v1186
    %1188 = vmatprep.subr.mxu0 0.0
    %v1189 = vand.u32 %v613, 4294901760
    %v1190 = vsub.f32 %v613, %v1189
    %v1191 = vand.u32 %v1190, 4294901760
    %1192 = vmatpush1.msra.mxu0 %v1191
    %1193 = vmatprep.subr.mxu0 0.0
    %1194 = vmatpush1.msra.mxu0 0.0
    %1195 = vmatprep.subr.mxu0 0.0
    %1196 = vmatpush1.msra.mxu0 0.0
    %1197 = vmatprep.subr.mxu0 0.0
    %1198 = vmatpush1.msra.mxu0 0.0
    %1199 = vmatprep.subr.mxu0 0.0
    %1200 = vmatpush1.msra.mxu0 0.0
    %1201 = vmatprep.subr.mxu0 0.0
    %1202 = vmatpush1.msra.mxu0 0.0
    %1203 = vmatprep.subr.mxu0 0.0
    %1204 = vmatpush1.msra.mxu0 0.0
    %1205 = vmatprep.subr.mxu0 0.0
    %1206 = vmatpush1.msra.mxu0 0.0
    %1207 = vmatprep.subr.mxu0 0.0
    %1208 = vmatpush1.msra.mxu0 0.0
    %1209 = vmatprep.subr.mxu0 0.0
    %1210 = vmatpush1.msra.mxu0 0.0
    %1211 = vmatprep.subr.mxu0 0.0
    %1212 = vmatpush1.msra.mxu0 0.0
    %1213 = vmatprep.subr.mxu0 0.0
    %1214 = vmatpush1.msra.mxu0 0.0
    %1215 = vmatprep.subr.mxu0 0.0
    %1216 = vmatpush1.msra.mxu0 0.0
    %1217 = vmatprep.subr.mxu0 0.0
    %1218 = vmatpush1.msra.mxu0 0.0
    %1219 = vmatprep.subr.mxu0 0.0
    %1220 = vmatpush1.msra.mxu0 0.0
    %1221 = vmatprep.subr.mxu0 0.0
    %1222 = vmatpush1.msra.mxu0 0.0
    %1223 = vmatprep.subr.mxu0 0.0
    %1224 = vmatpush1.msra.mxu0 0.0
    %1225 = vmatprep.subr.mxu0 0.0
    %1226 = vmatpush1.msra.mxu0 0.0
    %1227 = vmatprep.subr.mxu0 0.0
    %1228 = vmatpush1.msra.mxu0 0.0
    %1229 = vmatprep.subr.mxu0 0.0
    %1230 = vmatpush1.msra.mxu0 0.0
    %1231 = vmatprep.subr.mxu0 0.0
    %1232 = vmatpush1.msra.mxu0 0.0
    %1233 = vmatprep.subr.mxu0 0.0
    %1234 = vmatpush1.msra.mxu0 0.0
    %1235 = vmatprep.subr.mxu0 0.0
    %1236 = vmatpush1.msra.mxu0 0.0
    %1237 = vmatprep.subr.mxu0 0.0
    %1238 = vmatpush1.msra.mxu0 0.0
    %1239 = vmatprep.subr.mxu0 0.0
    %1240 = vmatpush1.msra.mxu0 0.0
    %1241 = vmatprep.mubr.f32.mxu0 0.0
    %v1242 = vand.u32 %v652, 4294901760
    %1243 = vmatmul.mubr.f32.gmra.mrb[0].mxu0 %v1242
    %v1244 = vpop.f32.mrb[0].mxu0
    %v1245 = vadd.f32 %v1118, %v1244
    %v1246 = vpop.f32.mrb[0].mxu0
    %1247 = vmatprep.mubr.f32.mxu0 0.0
    %v1248 = vand.u32 %v655, 4294901760
    %1249 = vmatmul.mubr.f32.gmra.mrb[0].mxu0 %v1248
    %v1250 = vpop.f32.mrb[0].mxu0
    %v1251 = vadd.f32 %v1126, %v1250
    %v1252 = vpop.f32.mrb[0].mxu0
    %1253 = vmatprep.mubr.f32.mxu0 0.0
    %v1254 = vand.u32 %v658, 4294901760
    %1255 = vmatmul.mubr.f32.gmra.mrb[0].mxu0 %v1254
    %v1256 = vpop.f32.mrb[0].mxu0
    %v1257 = vadd.f32 %v1134, %v1256
    %v1258 = vpop.f32.mrb[0].mxu0
    %1259 = vmatprep.mubr.f32.mxu0 0.0
    %v1260 = vand.u32 %v661, 4294901760
    %1261 = vmatmul.mubr.f32.gmra.mrb[0].mxu0 %v1260
    %v1262 = vpop.f32.mrb[0].mxu0
    %v1263 = vadd.f32 %v1142, %v1262
    %v1264 = vpop.f32.mrb[0].mxu0
    %1265 = vmatprep.mubr.f32.mxu0 0.0
    %v1266 = vand.u32 %v664, 4294901760
    %1267 = vmatmul.mubr.f32.gmra.mrb[0].mxu0 %v1266
    %v1268 = vpop.f32.mrb[0].mxu0
    %v1269 = vadd.f32 %v1150, %v1268
    %v1270 = vpop.f32.mrb[0].mxu0
    %1271 = vdwg.mxu0
    %1272 = vmatprep.subr.mxu0 0.0
    %v1273 = vand.u32 %v606, 4294901760
    %1274 = vmatpush1.msra.mxu0 %v1273
    %1275 = vmatprep.subr.mxu0 0.0
    %v1276 = vand.u32 %v607, 4294901760
    %1277 = vmatpush1.msra.mxu0 %v1276
    %1278 = vmatprep.subr.mxu0 0.0
    %v1279 = vand.u32 %v608, 4294901760
    %1280 = vmatpush1.msra.mxu0 %v1279
    %1281 = vmatprep.subr.mxu0 0.0
    %v1282 = vand.u32 %v609, 4294901760
    %1283 = vmatpush1.msra.mxu0 %v1282
    %1284 = vmatprep.subr.mxu0 0.0
    %v1285 = vand.u32 %v610, 4294901760
    %1286 = vmatpush1.msra.mxu0 %v1285
    %1287 = vmatprep.subr.mxu0 0.0
    %v1288 = vand.u32 %v611, 4294901760
    %1289 = vmatpush1.msra.mxu0 %v1288
    %1290 = vmatprep.subr.mxu0 0.0
    %v1291 = vand.u32 %v612, 4294901760
    %1292 = vmatpush1.msra.mxu0 %v1291
    %1293 = vmatprep.subr.mxu0 0.0
    %v1294 = vand.u32 %v613, 4294901760
    %1295 = vmatpush1.msra.mxu0 %v1294
    %1296 = vmatprep.subr.mxu0 0.0
    %1297 = vmatpush1.msra.mxu0 0.0
    %1298 = vmatprep.subr.mxu0 0.0
    %1299 = vmatpush1.msra.mxu0 0.0
    %1300 = vmatprep.subr.mxu0 0.0
    %1301 = vmatpush1.msra.mxu0 0.0
    %1302 = vmatprep.subr.mxu0 0.0
    %1303 = vmatpush1.msra.mxu0 0.0
    %1304 = vmatprep.subr.mxu0 0.0
    %1305 = vmatpush1.msra.mxu0 0.0
    %1306 = vmatprep.subr.mxu0 0.0
    %1307 = vmatpush1.msra.mxu0 0.0
    %1308 = vmatprep.subr.mxu0 0.0
    %1309 = vmatpush1.msra.mxu0 0.0
    %1310 = vmatprep.subr.mxu0 0.0
    %1311 = vmatpush1.msra.mxu0 0.0
    %1312 = vmatprep.subr.mxu0 0.0
    %1313 = vmatpush1.msra.mxu0 0.0
    %1314 = vmatprep.subr.mxu0 0.0
    %1315 = vmatpush1.msra.mxu0 0.0
    %1316 = vmatprep.subr.mxu0 0.0
    %1317 = vmatpush1.msra.mxu0 0.0
    %1318 = vmatprep.subr.mxu0 0.0
    %1319 = vmatpush1.msra.mxu0 0.0
    %1320 = vmatprep.subr.mxu0 0.0
    %1321 = vmatpush1.msra.mxu0 0.0
    %1322 = vmatprep.subr.mxu0 0.0
    %1323 = vmatpush1.msra.mxu0 0.0
    %1324 = vmatprep.subr.mxu0 0.0
    %1325 = vmatpush1.msra.mxu0 0.0
    %1326 = vmatprep.subr.mxu0 0.0
    %1327 = vmatpush1.msra.mxu0 0.0
    %1328 = vmatprep.subr.mxu0 0.0
    %1329 = vmatpush1.msra.mxu0 0.0
    %1330 = vmatprep.subr.mxu0 0.0
    %1331 = vmatpush1.msra.mxu0 0.0
    %1332 = vmatprep.subr.mxu0 0.0
    %1333 = vmatpush1.msra.mxu0 0.0
    %1334 = vmatprep.subr.mxu0 0.0
    %1335 = vmatpush1.msra.mxu0 0.0
    %1336 = vmatprep.subr.mxu0 0.0
    %1337 = vmatpush1.msra.mxu0 0.0
    %1338 = vmatprep.subr.mxu0 0.0
    %1339 = vmatpush1.msra.mxu0 0.0
    %1340 = vmatprep.subr.mxu0 0.0
    %1341 = vmatpush1.msra.mxu0 0.0
    %1342 = vmatprep.subr.mxu0 0.0
    %1343 = vmatpush1.msra.mxu0 0.0
    %1344 = vmatprep.mubr.f32.mxu0 0.0
    %v1345 = vand.u32 %v652, 4294901760
    %1346 = vmatmul.mubr.f32.gmra.mrb[0].mxu0 %v1345
    %v1347 = vpop.f32.mrb[0].mxu0
    %v1348 = vadd.f32 %v1245, %v1347
    %v1349 = vpop.f32.mrb[0].mxu0
    %1350 = vmatprep.mubr.f32.mxu0 0.0
    %v1351 = vand.u32 %v655, 4294901760
    %1352 = vmatmul.mubr.f32.gmra.mrb[0].mxu0 %v1351
    %v1353 = vpop.f32.mrb[0].mxu0
    %v1354 = vadd.f32 %v1251, %v1353
    %v1355 = vpop.f32.mrb[0].mxu0
    %1356 = vmatprep.mubr.f32.mxu0 0.0
    %v1357 = vand.u32 %v658, 4294901760
    %1358 = vmatmul.mubr.f32.gmra.mrb[0].mxu0 %v1357
    %v1359 = vpop.f32.mrb[0].mxu0
    %v1360 = vadd.f32 %v1257, %v1359
    %v1361 = vpop.f32.mrb[0].mxu0
    %1362 = vmatprep.mubr.f32.mxu0 0.0
    %v1363 = vand.u32 %v661, 4294901760
    %1364 = vmatmul.mubr.f32.gmra.mrb[0].mxu0 %v1363
    %v1365 = vpop.f32.mrb[0].mxu0
    %v1366 = vadd.f32 %v1263, %v1365
    %v1367 = vpop.f32.mrb[0].mxu0
    %1368 = vmatprep.mubr.f32.mxu0 0.0
    %v1369 = vand.u32 %v664, 4294901760
    %1370 = vmatmul.mubr.f32.gmra.mrb[0].mxu0 %v1369
    %v1371 = vpop.f32.mrb[0].mxu0
    %v1372 = vadd.f32 %v1269, %v1371
    %v1373 = vpop.f32.mrb[0].mxu0
    %1374 = vdwg.mxu0
    %vm1375 = vcmask 392192
    %1376 = vst.msk [vmem:[#allocation2] sm:$0xff] %vm1375, %v1348
    %1377 = vst.msk [vmem:[#allocation4] sm:$0xff] %vm1375, %v1354
    %1378 = vst.msk [vmem:[#allocation6] sm:$0xff] %vm1375, %v1360
    %1379 = vst.msk [vmem:[#allocation7] sm:$0xff] %vm1375, %v1366
    %1380 = vst.msk [vmem:[#allocation9] sm:$0xff] %vm1375, %v1372
    // Predicated region
    $region14: #{sgcn_forward.1} parent=1 // pred_check
      _
    $region15: #{sgcn_forward.1} parent=1 // pred_check_branch
      %1382 = sbr.rel (0) target = $region17
    $region16: #{sgcn_forward.1} parent=1 // pred_region
      %s1384 = ssub.s32 128, 128
      %1385 = vsyncadd [#allocation3], %s1384
      %s1387 = sshll.u32 [#allocation2], 4
      %s1388 = int_to_ptr.vmem [resolvable:$true] %s1387
      %1390 = dma.vmem_to_hbm [thread:$0]  %s1388, 128, %s3, [#allocation3]
    $region17: #{sgcn_forward.1} parent=1 // pred_fallthru
      _
    // Predicated region
    $region18: #{sgcn_forward.1} parent=1 // pred_check
      _
    $region19: #{sgcn_forward.1} parent=1 // pred_check_branch
      %1392 = sbr.rel (0) target = $region21
    $region20: #{sgcn_forward.1} parent=1 // pred_region
      %s1394 = ssub.s32 128, 128
      %1395 = vsyncadd [#allocation5], %s1394
      %s1397 = sshll.u32 [#allocation4], 4
      %s1398 = int_to_ptr.vmem [resolvable:$true] %s1397
      %1400 = dma.vmem_to_hbm [thread:$0]  %s1398, 128, %s4, [#allocation5]
    $region21: #{sgcn_forward.1} parent=1 // pred_fallthru
      _
    // Predicated region
    $region22: #{sgcn_forward.1} parent=1 // pred_check
      _
    $region23: #{sgcn_forward.1} parent=1 // pred_check_branch
      %1402 = sbr.rel (0) target = $region25
    $region24: #{sgcn_forward.1} parent=1 // pred_region
      %s1404 = ssub.s32 128, 128
      %1405 = vsyncadd [#allocation5], %s1404
      %s1407 = sshll.u32 [#allocation6], 4
      %s1408 = int_to_ptr.vmem [resolvable:$true] %s1407
      %1410 = dma.vmem_to_hbm [thread:$0]  %s1408, 128, %s5, [#allocation5]
    $region25: #{sgcn_forward.1} parent=1 // pred_fallthru
      _
    // Predicated region
    $region26: #{sgcn_forward.1} parent=1 // pred_check
      _
    $region27: #{sgcn_forward.1} parent=1 // pred_check_branch
      %1412 = sbr.rel (0) target = $region29
    $region28: #{sgcn_forward.1} parent=1 // pred_region
      %s1414 = ssub.s32 128, 128
      %1415 = vsyncadd [#allocation8], %s1414
      %s1417 = sshll.u32 [#allocation7], 4
      %s1418 = int_to_ptr.vmem [resolvable:$true] %s1417
      %1420 = dma.vmem_to_hbm [thread:$0]  %s1418, 128, %s6, [#allocation8]
    $region29: #{sgcn_forward.1} parent=1 // pred_fallthru
      _
    // Predicated region
    $region30: #{sgcn_forward.1} parent=1 // pred_check
      _
    $region31: #{sgcn_forward.1} parent=1 // pred_check_branch
      %1422 = sbr.rel (0) target = $region33
    $region32: #{sgcn_forward.1} parent=1 // pred_region
      %s1424 = ssub.s32 128, 128
      %1425 = vsyncadd [#allocation8], %s1424
      %s1427 = sshll.u32 [#allocation9], 4
      %s1428 = int_to_ptr.vmem [resolvable:$true] %s1427
      %1430 = dma.vmem_to_hbm [thread:$0]  %s1428, 128, %s7, [#allocation8]
    $region33: #{sgcn_forward.1} parent=1 // pred_fallthru
      _
    // Predicated region
    $region34: #{sgcn_forward.1} parent=1 // pred_check
      _
    $region35: #{sgcn_forward.1} parent=1 // pred_check_branch
      %1432 = sbr.rel (0) target = $region37
    $region36: #{sgcn_forward.1} parent=1 // pred_region
      %1433 = dma.done [#allocation3], 128
    $region37: #{sgcn_forward.1} parent=1 // pred_fallthru
      _
    // Predicated region
    $region38: #{sgcn_forward.1} parent=1 // pred_check
      _
    $region39: #{sgcn_forward.1} parent=1 // pred_check_branch
      %1435 = sbr.rel (0) target = $region41
    $region40: #{sgcn_forward.1} parent=1 // pred_region
      %1436 = dma.done [#allocation5], 128
    $region41: #{sgcn_forward.1} parent=1 // pred_fallthru
      _
    // Predicated region
    $region42: #{sgcn_forward.1} parent=1 // pred_check
      _
    $region43: #{sgcn_forward.1} parent=1 // pred_check_branch
      %1438 = sbr.rel (0) target = $region45
    $region44: #{sgcn_forward.1} parent=1 // pred_region
      %1439 = dma.done [#allocation5], 128
    $region45: #{sgcn_forward.1} parent=1 // pred_fallthru
      _
    // Predicated region
    $region46: #{sgcn_forward.1} parent=1 // pred_check
      _
    $region47: #{sgcn_forward.1} parent=1 // pred_check_branch
      %1441 = sbr.rel (0) target = $region49
    $region48: #{sgcn_forward.1} parent=1 // pred_region
      %1442 = dma.done [#allocation8], 128
    $region49: #{sgcn_forward.1} parent=1 // pred_fallthru
      _
    // Predicated region
    $region50: #{sgcn_forward.1} parent=1 // pred_check
      _
    $region51: #{sgcn_forward.1} parent=1 // pred_check_branch
      %1444 = sbr.rel (0) target = $region53
    $region52: #{sgcn_forward.1} parent=1 // pred_region
      %1445 = dma.done [#allocation8], 128
    $region53: #{sgcn_forward.1} parent=1 // pred_fallthru
      _
    %1446 = vsyncpa [#allocation3], 1
    %1447 = vsyncpa [#allocation5], 1
    %1448 = vsyncpa [#allocation8], 1

</llo_original>
